<compile_context>
chip_gen: v7x
topology: tpu7x:2x2x1
jax: 0.10.0
libtpu: 0.0.40
codegen_flags: <defaults>
</compile_context>

<pallas_src>
import functools

import jax
import jax.numpy as jnp
from jax.experimental import pallas as pl
from jax.experimental.pallas import tpu as pltpu


def _convblock_kernel(x_ref, w_ref, b_ref, a_ref, o_ref, acc_ref,
                      *, tile_h, w_out, k_h, cout_sub):
    """One (batch, h-tile) grid step: KH packed matmuls + bias + PReLU + transpose."""
    rows_out = tile_h * w_out

    # kh = 0 initializes the accumulator in place (no zero-fill, no value temporaries);
    # remaining taps accumulate with `+=` (v7x can keep this in the MXU result buffer).
    # Every LHS slab is a statically-offset, sublane-aligned window of the halo'd tile.
    acc_ref[...] = jnp.dot(x_ref[0, 0, 0:rows_out, :], w_ref[0],
                           preferred_element_type=jnp.float32)
    for kh in range(1, k_h):
        lhs = x_ref[0, 0, kh * w_out: kh * w_out + rows_out, :]
        acc_ref[...] += jnp.dot(lhs, w_ref[kh], preferred_element_type=jnp.float32)

    out = acc_ref[...] + b_ref[...]              # (rows_out, Cout_pad128) f32
    alpha = a_ref[0, 0]                          # shared PReLU alpha (SMEM scalar)
    out = jnp.where(out > 0, out, alpha * out)

    # Channels -> sublanes, pixels -> lanes: lane-dense store of only the real channels
    # (rounded up to the f32 sublane pack of 8).  The 128-wide transpose is an XLU op
    # and rides in otherwise-idle vector-extended slots.
    o_ref[...] = jnp.transpose(out)[None, :cout_sub, :].astype(o_ref.dtype)


def _vmem_capacity_bytes():
    try:
        cap = getattr(pltpu.get_tpu_info(), "vmem_capacity_bytes", None)
        if cap:
            return int(cap)
    except Exception:
        pass
    return 64 * 1024 * 1024            # conservative fallback (v7x per-core VMEM)


def _pick_tile_h(h_o, w_o, k_h, k_pack, cout_sub, c_out_p, budget_bytes):
    """Largest divisor of Ho whose per-step VMEM footprint fits the budget and whose
    flattened output rows are lane-aligned (128) -- or the full image."""
    best = h_o
    for cand in range(h_o, 0, -1):
        if h_o % cand:
            continue
        rows_out = cand * w_o
        if rows_out % 128 and cand != h_o:
            continue                              # out-block last dim must be 128-aligned
        rows_in = (cand + k_h - 1) * w_o
        est = (2 * rows_in * k_pack * 2           # double-buffered bf16 input block
               + 2 * cout_sub * rows_out * 4      # double-buffered f32 output block
               + rows_out * c_out_p * 4           # f32 accumulator scratch
               + 2 * k_h * k_pack * c_out_p * 2   # weights (double-buffered)
               + 2 * c_out_p * 4)                 # bias
        if est <= budget_bytes:
            return cand
        best = cand                               # smallest legal tile seen so far
    return best


def conv_block(x_nchw, weight_oihw, bias, alpha, *, padding=1, stride=1, tile_h=None):
    """ConvBlock forward (Conv2d + bias + PReLU, batch_norm=False).  Only stride=1."""
    assert stride == 1  # TODO(synk): generalize to strided conv if DRAGN needs it.
    n_b, c_in, h, w = x_nchw.shape
    c_out, c_in_w, k_h, k_w = weight_oihw.shape
    assert c_in_w == c_in

    h_p, w_p = h + 2 * padding, w + 2 * padding
    h_o = h_p - k_h + 1
    w_o = w_p - k_w + 1
    k_pack = k_w * c_in

    # Cout padded to lane width only for the matmul / accumulator (dense vregs); just
    # round_up(Cout, 8) channels ever reach HBM.
    # TODO(synk): consider 256-wide Cout tiles on v6e/v7x once Cout makes the MXU N-dim
    # the limiter (it isn't for DRAGN's small channel counts).
    c_out_p = ((c_out + 127) // 128) * 128
    cout_sub = ((c_out + 7) // 8) * 8

    if tile_h is None:
        budget = int(0.4 * _vmem_capacity_bytes())
        tile_h = _pick_tile_h(h_o, w_o, k_h, k_pack, cout_sub, c_out_p, budget)
    assert h_o % tile_h == 0, "tile_h must divide the output height"
    rows_out = tile_h * w_o
    rows_in = (tile_h + k_h - 1) * w_o
    assert rows_out % 128 == 0 or tile_h == h_o, \
        "flattened tile rows must be lane-aligned (or the tile must be the full image)"
    # TODO(synk): the epilogue transpose assumes rows_out % 8 == 0; pad Wo if a DRAGN
    # config ever violates this.
    num_t = h_o // tile_h

    # ---- layout prep (plain XLA glue, bf16, fused with the kernel under jit) ----
    x = jnp.transpose(x_nchw, (0, 2, 3, 1)).astype(jnp.bfloat16)               # NHWC
    x = jnp.pad(x, ((0, 0), (padding, padding), (padding, padding), (0, 0)))
    # kw-pack: P[n, hp, wo, kw*Cin + c] = x_pad[n, hp, wo + kw, c]
    x = jnp.concatenate([x[:, :, kw:kw + w_o, :] for kw in range(k_w)], axis=-1)
    # Halo'd H-window per tile (identity / no replication when num_t == 1).
    x = jnp.stack(
        [x[:, t * tile_h: t * tile_h + tile_h + k_h - 1] for t in range(num_t)],
        axis=1)
    x = x.reshape(n_b, num_t, rows_in, k_pack)

    # weights -> (KH, KW*Cin, Cout_pad) bf16; bias -> (1, Cout_pad) f32; alpha scalar.
    w2 = jnp.transpose(weight_oihw, (2, 3, 1, 0)).reshape(k_h, k_pack, c_out)
    w2 = jnp.pad(w2, ((0, 0), (0, 0), (0, c_out_p - c_out))).astype(jnp.bfloat16)
    b2 = jnp.pad(bias.astype(jnp.float32), (0, c_out_p - c_out)).reshape(1, c_out_p)
    a2 = jnp.reshape(alpha, (1, 1)).astype(jnp.float32)

    kernel = functools.partial(_convblock_kernel, tile_h=tile_h, w_out=w_o,
                               k_h=k_h, cout_sub=cout_sub)

    flops = 2 * n_b * h_o * w_o * c_out * k_h * k_w * c_in
    bytes_acc = (x.size * 2 + w2.size * 2 + b2.size * 4
                 + n_b * cout_sub * h_o * w_o * 4)
    vmem_limit = int(0.75 * _vmem_capacity_bytes())

    out = pl.pallas_call(
        kernel,
        out_shape=jax.ShapeDtypeStruct((n_b, cout_sub, h_o * w_o), jnp.float32),
        grid=(n_b, num_t),
        in_specs=[
            pl.BlockSpec((1, 1, rows_in, k_pack), lambda n, t: (n, t, 0, 0)),
            pl.BlockSpec((k_h, k_pack, c_out_p), lambda n, t: (0, 0, 0)),
            pl.BlockSpec((1, c_out_p), lambda n, t: (0, 0)),
            pl.BlockSpec(memory_space=pltpu.MemorySpace.SMEM),   # PReLU alpha scalar
        ],
        out_specs=pl.BlockSpec((1, cout_sub, rows_out), lambda n, t: (n, 0, t)),
        scratch_shapes=[pltpu.VMEM((rows_out, c_out_p), jnp.float32)],
        compiler_params=pltpu.CompilerParams(
            dimension_semantics=("parallel", "parallel"),
            vmem_limit_bytes=vmem_limit,
        ),
        cost_estimate=pl.CostEstimate(
            flops=flops, transcendentals=0, bytes_accessed=bytes_acc),
    )(x, w2, b2, a2)

    # Channels already lead: slice off sublane padding and reshape straight to NCHW.
    return out[:, :c_out, :].reshape(n_b, c_out, h_o, w_o)


def reference_conv_block(x_nchw, weight_oihw, bias, alpha, *, padding=1, stride=1):
    out = jax.lax.conv_general_dilated(
        x_nchw, weight_oihw,
        window_strides=(stride, stride),
        padding=[(padding, padding), (padding, padding)],
        dimension_numbers=("NCHW", "OIHW", "NCHW"),
    )
    out = out + bias.reshape(1, -1, 1, 1)
    return jnp.where(out > 0, out, alpha * out)


if __name__ == "__main__":
    key = jax.random.PRNGKey(0)
    key_x, key_w, key_b = jax.random.split(key, 3)

    n_b, c_in, h, w = 2, 4, 16, 16
    c_out, kh, kw = 8, 3, 3

    x = jax.random.normal(key_x, (n_b, c_in, h, w), dtype=jnp.float32)
    # Shapes match nn.Conv2d(4, 8, 3, padding=1) + nn.PReLU().
    weight = 0.1 * jax.random.normal(key_w, (c_out, c_in, kh, kw), dtype=jnp.float32)
    bias = 0.1 * jax.random.normal(key_b, (c_out,), dtype=jnp.float32)
    alpha = jnp.float32(0.25)   # PyTorch PReLU default init

    # Main path: VMEM-budget tile picker (whole image per batch element at this size);
    # the layout prep is jitted together with the pallas_call so XLA fuses it.
    fwd = jax.jit(lambda x_, w_, b_, a_: conv_block(x_, w_, b_, a_, padding=1, stride=1))
    out = jax.block_until_ready(fwd(x, weight, bias, alpha))
    assert out.shape == (n_b, c_out, h, w)

    # Also exercise the multi-tile halo'd-window path (tile_h=8 -> 2 spatial tiles).
    fwd_t = jax.jit(lambda x_, w_, b_, a_: conv_block(x_, w_, b_, a_, padding=1,
                                                      stride=1, tile_h=8))
    out_t = jax.block_until_ready(fwd_t(x, weight, bias, alpha))

    # Tight check vs. a reference fed the same bf16-quantized operands (isolates
    # kernel correctness from bf16 input quantization)...
    xq = x.astype(jnp.bfloat16).astype(jnp.float32)
    wq = weight.astype(jnp.bfloat16).astype(jnp.float32)
    ref_q = reference_conv_block(xq, wq, bias, alpha, padding=1, stride=1)
    assert jnp.allclose(out, ref_q, atol=2e-3, rtol=2e-3)
    assert jnp.allclose(out_t, ref_q, atol=2e-3, rtol=2e-3)

    # ...and a looser check vs. the exact f32 module semantics.
    ref = reference_conv_block(x, weight, bias, alpha, padding=1, stride=1)
    assert jnp.allclose(out, ref, atol=5e-2, rtol=5e-2)

    print("KERNEL_OK")
</pallas_src>

<mosaic_0001>
module attributes {stable_mosaic.version = 11 : i64} {
  func.func @_convblock_kernel(%arg0: i32, %arg1: i32, %arg2: memref<1x1x288x12xbf16, #tpu.memory_space<vmem>>, %arg3: memref<3x12x128xbf16, #tpu.memory_space<vmem>>, %arg4: memref<1x128xf32, #tpu.memory_space<vmem>>, %arg5: memref<1x1xf32, #tpu.memory_space<smem>>, %arg6: memref<1x8x256xf32, #tpu.memory_space<vmem>>, %arg7: memref<256x128xf32, #tpu.memory_space<vmem>>) attributes {dimension_semantics = [#tpu.dimension_semantics<parallel>, #tpu.dimension_semantics<parallel>], iteration_bounds = array<i64: 2, 1>, scalar_prefetch = 0 : i64, scratch_operands = 1 : i64, tpu.core_type = #tpu.core_type<tc>, window_params = [{transform_indices = @transform_0, window_bounds = array<i64: 1, 1, 288, 12>}, {pipeline_mode = #tpu.pipeline_mode<synchronous>, transform_indices = @transform_1, window_bounds = array<i64: 3, 12, 128>}, {pipeline_mode = #tpu.pipeline_mode<synchronous>, transform_indices = @transform_2, window_bounds = array<i64: 1, 128>}, {transform_indices = @transform_3, window_bounds = array<i64: 1, 1>}, {transform_indices = @transform_4, window_bounds = array<i64: 1, 8, 256>}]} {
    %c0 = arith.constant 0 : index
    %c0_0 = arith.constant 0 : index
    %c0_1 = arith.constant 0 : index
    %c0_2 = arith.constant 0 : index
    %0 = vector.load %arg2[%c0, %c0_0, %c0_1, %c0_2] : memref<1x1x288x12xbf16, #tpu.memory_space<vmem>>, vector<1x1x256x12xbf16>
    %1 = vector.shape_cast %0 : vector<1x1x256x12xbf16> to vector<256x12xbf16>
    %c0_3 = arith.constant 0 : index
    %c0_4 = arith.constant 0 : index
    %c0_5 = arith.constant 0 : index
    %2 = vector.load %arg3[%c0_3, %c0_4, %c0_5] : memref<3x12x128xbf16, #tpu.memory_space<vmem>>, vector<1x12x128xbf16>
    %3 = vector.shape_cast %2 : vector<1x12x128xbf16> to vector<12x128xbf16>
    %cst = arith.constant dense<0.000000e+00> : vector<256x128xf32>
    %4 = tpu.matmul %1, %3, %cst {dimension_numbers = #tpu.dot_dimension_numbers<[1], [0], [0], [1], [0, 0, 1, 1], [], []>} : vector<256x12xbf16>, vector<12x128xbf16>, vector<256x128xf32> -> vector<256x128xf32>
    %c0_6 = arith.constant 0 : index
    %c0_7 = arith.constant 0 : index
    %5 = vector.load %arg7[%c0_6, %c0_7] : memref<256x128xf32, #tpu.memory_space<vmem>>, vector<256x128xf32>
    tpu.vector_store %arg7[%c0_6, %c0_7], %4 {strides = array<i32>} : memref<256x128xf32, #tpu.memory_space<vmem>>, vector<256x128xf32>,
    %c0_8 = arith.constant 0 : index
    %c0_9 = arith.constant 0 : index
    %c16 = arith.constant 16 : index
    %c0_10 = arith.constant 0 : index
    %6 = vector.load %arg2[%c0_8, %c0_9, %c16, %c0_10] : memref<1x1x288x12xbf16, #tpu.memory_space<vmem>>, vector<1x1x256x12xbf16>
    %7 = vector.shape_cast %6 : vector<1x1x256x12xbf16> to vector<256x12xbf16>
    %c0_11 = arith.constant 0 : index
    %c0_12 = arith.constant 0 : index
    %8 = vector.load %arg7[%c0_11, %c0_12] : memref<256x128xf32, #tpu.memory_space<vmem>>, vector<256x128xf32>
    %c1 = arith.constant 1 : index
    %c0_13 = arith.constant 0 : index
    %c0_14 = arith.constant 0 : index
    %9 = vector.load %arg3[%c1, %c0_13, %c0_14] : memref<3x12x128xbf16, #tpu.memory_space<vmem>>, vector<1x12x128xbf16>
    %10 = vector.shape_cast %9 : vector<1x12x128xbf16> to vector<12x128xbf16>
    %cst_15 = arith.constant dense<0.000000e+00> : vector<256x128xf32>
    %11 = tpu.matmul %7, %10, %cst_15 {dimension_numbers = #tpu.dot_dimension_numbers<[1], [0], [0], [1], [0, 0, 1, 1], [], []>} : vector<256x12xbf16>, vector<12x128xbf16>, vector<256x128xf32> -> vector<256x128xf32>
    %12 = arith.addf %8, %11 : vector<256x128xf32>
    %c0_16 = arith.constant 0 : index
    %c0_17 = arith.constant 0 : index
    %13 = vector.load %arg7[%c0_16, %c0_17] : memref<256x128xf32, #tpu.memory_space<vmem>>, vector<256x128xf32>
    tpu.vector_store %arg7[%c0_16, %c0_17], %12 {strides = array<i32>} : memref<256x128xf32, #tpu.memory_space<vmem>>, vector<256x128xf32>,
    %c0_18 = arith.constant 0 : index
    %c0_19 = arith.constant 0 : index
    %c32 = arith.constant 32 : index
    %c0_20 = arith.constant 0 : index
    %14 = vector.load %arg2[%c0_18, %c0_19, %c32, %c0_20] : memref<1x1x288x12xbf16, #tpu.memory_space<vmem>>, vector<1x1x256x12xbf16>
    %15 = vector.shape_cast %14 : vector<1x1x256x12xbf16> to vector<256x12xbf16>
    %c0_21 = arith.constant 0 : index
    %c0_22 = arith.constant 0 : index
    %16 = vector.load %arg7[%c0_21, %c0_22] : memref<256x128xf32, #tpu.memory_space<vmem>>, vector<256x128xf32>
    %c2 = arith.constant 2 : index
    %c0_23 = arith.constant 0 : index
    %c0_24 = arith.constant 0 : index
    %17 = vector.load %arg3[%c2, %c0_23, %c0_24] : memref<3x12x128xbf16, #tpu.memory_space<vmem>>, vector<1x12x128xbf16>
    %18 = vector.shape_cast %17 : vector<1x12x128xbf16> to vector<12x128xbf16>
    %cst_25 = arith.constant dense<0.000000e+00> : vector<256x128xf32>
    %19 = tpu.matmul %15, %18, %cst_25 {dimension_numbers = #tpu.dot_dimension_numbers<[1], [0], [0], [1], [0, 0, 1, 1], [], []>} : vector<256x12xbf16>, vector<12x128xbf16>, vector<256x128xf32> -> vector<256x128xf32>
    %20 = arith.addf %16, %19 : vector<256x128xf32>
    %c0_26 = arith.constant 0 : index
    %c0_27 = arith.constant 0 : index
    %21 = vector.load %arg7[%c0_26, %c0_27] : memref<256x128xf32, #tpu.memory_space<vmem>>, vector<256x128xf32>
    tpu.vector_store %arg7[%c0_26, %c0_27], %20 {strides = array<i32>} : memref<256x128xf32, #tpu.memory_space<vmem>>, vector<256x128xf32>,
    %c0_28 = arith.constant 0 : index
    %c0_29 = arith.constant 0 : index
    %22 = vector.load %arg7[%c0_28, %c0_29] : memref<256x128xf32, #tpu.memory_space<vmem>>, vector<256x128xf32>
    %c0_30 = arith.constant 0 : index
    %c0_31 = arith.constant 0 : index
    %23 = vector.load %arg4[%c0_30, %c0_31] : memref<1x128xf32, #tpu.memory_space<vmem>>, vector<1x128xf32>
    %24 = vector.broadcast %23 : vector<1x128xf32> to vector<256x128xf32>
    %25 = arith.addf %22, %24 : vector<256x128xf32>
    %c0_32 = arith.constant 0 : index
    %c0_33 = arith.constant 0 : index
    %26 = memref.load %arg5[%c0_32, %c0_33] : memref<1x1xf32, #tpu.memory_space<smem>>
    %cst_34 = arith.constant 0.000000e+00 : f32
    %27 = vector.broadcast %cst_34 : f32 to vector<256x128xf32>
    %28 = arith.cmpf ogt, %25, %27 : vector<256x128xf32>
    %29 = vector.broadcast %26 : f32 to vector<256x128xf32>
    %30 = arith.mulf %29, %25 : vector<256x128xf32>
    %31 = arith.select %28, %25, %30 : vector<256x128xi1>, vector<256x128xf32>
    %32 = tpu.transpose %31, [1, 0] : vector<256x128xf32> -> vector<128x256xf32>
    %33 = vector.extract_strided_slice %32 {offsets = [0, 0], sizes = [8, 256], strides = [1, 1]} : vector<128x256xf32> to vector<8x256xf32>
    %34 = vector.shape_cast %33 : vector<8x256xf32> to vector<1x8x256xf32>
    %c0_35 = arith.constant 0 : index
    %c0_36 = arith.constant 0 : index
    %c0_37 = arith.constant 0 : index
    %35 = vector.load %arg6[%c0_35, %c0_36, %c0_37] : memref<1x8x256xf32, #tpu.memory_space<vmem>>, vector<1x8x256xf32>
    tpu.vector_store %arg6[%c0_35, %c0_36, %c0_37], %34 {strides = array<i32>} : memref<1x8x256xf32, #tpu.memory_space<vmem>>, vector<1x8x256xf32>,
    return
  }
  func.func @transform_0(%arg0: i32, %arg1: i32) -> (i32, i32, i32, i32) {
    %c0_i32 = arith.constant 0 : i32
    %c0_i32_0 = arith.constant 0 : i32
    %c0_i32_1 = arith.constant 0 : i32
    return %arg0, %arg1, %c0_i32, %c0_i32_0 : i32, i32, i32, i32
  }
  func.func @transform_1(%arg0: i32, %arg1: i32) -> (i32, i32, i32) {
    %c0_i32 = arith.constant 0 : i32
    %c0_i32_0 = arith.constant 0 : i32
    %c0_i32_1 = arith.constant 0 : i32
    %c0_i32_2 = arith.constant 0 : i32
    return %c0_i32, %c0_i32_0, %c0_i32_1 : i32, i32, i32
  }
  func.func @transform_2(%arg0: i32, %arg1: i32) -> (i32, i32) {
    %c0_i32 = arith.constant 0 : i32
    %c0_i32_0 = arith.constant 0 : i32
    %c0_i32_1 = arith.constant 0 : i32
    return %c0_i32, %c0_i32_0 : i32, i32
  }
  func.func @transform_3(%arg0: i32, %arg1: i32) -> (i32, i32) {
    %c0_i32 = arith.constant 0 : i32
    %c0_i32_0 = arith.constant 0 : i32
    %c0_i32_1 = arith.constant 0 : i32
    return %c0_i32, %c0_i32_0 : i32, i32
  }
  func.func @transform_4(%arg0: i32, %arg1: i32) -> (i32, i32, i32) {
    %c0_i32 = arith.constant 0 : i32
    %c0_i32_0 = arith.constant 0 : i32
    return %arg0, %c0_i32, %arg1 : i32, i32, i32
  }
}

</mosaic_0001>

<llo_original>
// kernel: _lambda_.1
$region0: #{_lambda_.1}
  #allocation0 [shape = 'u32[]', space=smem, size = 0x4, offset = 0x4, fixed_abs, tag = 'smem constant byte address 0x4 - core index']
  #allocation1 [shape = 'u32[144,128]{1,0:T(1,128)}', space=vmem, size = 0x12000, scoped, tag = 'internal scratch']
  #allocation2 [shape = 'f32[256,128]{1,0:T(8,128)}', space=vmem, size = 0x20000, scoped, tag = 'scratch operand']
  #allocation3 [shape = 'f32[1,1]{1,0:T(1,128)S(6)}', space=smem, size = 0x200, scoped, tag = 'scoped memory for _lambda_.1']
  %s0 = inlined_call_operand.vmem [shape: bf16[2,1,288,12], index: 0, kind: input, shape index: {}]
  %s1 = inlined_call_operand.vmem [shape: bf16[3,12,128], index: 1, kind: input, shape index: {}]
  %s2 = inlined_call_operand.vmem [shape: f32[1,128], index: 2, kind: input, shape index: {}]
  %s3 = inlined_call_operand.<no memory space> [shape: f32[1,1], index: 3, kind: input, shape index: {}]
  %s4 = inlined_call_operand.vmem [shape: f32[2,8,256], index: 4, kind: output, shape index: {}]
  %s5 = sld [smem:[#allocation0]]
  $region49: #{_lambda_.1} parent=0
    _
  %s7 = ssub.s32 1, %s5
  %s8 = scalar_select 0, %s7, %s5
  %9 = sst [smem:[#allocation3]] %s3
  loop: start=0, step=1, limit=4
  $region2: #{_lambda_.1} parent=0 // loop_pre_header
    _
  $region3: #{_lambda_.1} parent=0 // loop_header
    %s11 = sphi 0, %s15
    %p12 = scmp.ge.s32.totalorder %s11, 4
    %s18 = sphi 0, %s30
    %s19 = sphi 0, %s26
    %s20 = sphi 0, %s18
    %s21 = sphi 0, %s19
    %s22 = sphi 0, %s20
    %s23 = sphi 0, %s21
    %s35 = sphi 0, %s37
    %s38 = sphi 0, %s35
    %s39 = sphi 0, %s38
    %s55 = sphi 0, %s39
    %s59 = sphi 0, %s59
    %s61 = sphi 0, %s59
    %s62 = sphi 0, %s61
    %s76 = sphi 0, %s62
    %s80 = sphi 0, %s80
    %s82 = sphi 0, %s80
    %s83 = sphi 0, %s82
    %s97 = sphi 0, %s83
    %s101 = sphi 0, %s101
    %s103 = sphi 0, %s101
    %s104 = sphi 0, %s103
    %s118 = sphi 0, %s104
    %s126 = sphi 0, %s128
    %s129 = sphi 0, %s126
    %s130 = sphi 0, %s129
    %s146 = sphi 0, %s130
  $region4: #{_lambda_.1} parent=0 // loop_header_branch
    %14 = sbr.rel (%p12) target = $region8
  $region5: #{_lambda_.1} parent=0 // loop_body
    %s16 = ssub.s32 %s11, 1
    %s17 = ssub.s32 %s11, 2
    %s24 = sadd.s32 1, %s19
    %p25 = scmp.ge.s32.totalorder %s24, 1
    %s26 = scalar_select %p25, 0, %s24
    %s27 = sadd.s32 1, %s18
    %s28 = scalar_select %p25, %s27, %s18
    %p29 = scmp.ge.s32.totalorder %s28, 2
    %s30 = scalar_select %p29, 0, %s28
    %s31 = ssub.s32 %s18, %s30
    %s32 = ssub.s32 %s19, %s26
    %s33 = sor.u32 %s31, %s32
    %p34 = scmp.eq.s32.totalorder %s33, 0
    %s36 = sadd.s32 %s35, 1
    %s37 = scalar_select %p34, %s35, %s36
    %p40 = pneg %p34
    %p41 = scmp.eq.s32.totalorder %s11, 1
    %p42 = por %p40, %p41
    %p43 = scmp.ne.s32.totalorder %s35, %s38
    %p44 = scmp.eq.s32.totalorder %s11, 0
    %p45 = por %p43, %p44
    %p46 = scmp.ne.s32.totalorder %s35, %s38
    %p47 = scmp.eq.s32.totalorder %s16, 1
    %p48 = por %p46, %p47
    %p49 = scmp.ne.s32.totalorder %s38, %s39
    %p50 = scmp.eq.s32.totalorder %s16, 0
    %p51 = por %p49, %p50
    %p52 = scmp.ne.s32.totalorder %s38, %s39
    %p53 = scmp.eq.s32.totalorder %s17, 1
    %p54 = por %p52, %p53
    %p56 = scmp.ne.s32.totalorder %s39, %s55
    %p57 = scmp.eq.s32.totalorder %s17, 0
    %p58 = por %p56, %p57
    %s60 = sadd.s32 %s59, 1
    %p63 = scmp.eq.s32.totalorder %s11, 1
    %p64 = scmp.ne.s32.totalorder %s59, %s61
    %p65 = scmp.eq.s32.totalorder %s11, 0
    %p66 = por %p64, %p65
    %p67 = scmp.ne.s32.totalorder %s59, %s61
    %p68 = scmp.eq.s32.totalorder %s16, 1
    %p69 = por %p67, %p68
    %p70 = scmp.ne.s32.totalorder %s61, %s62
    %p71 = scmp.eq.s32.totalorder %s16, 0
    %p72 = por %p70, %p71
    %p73 = scmp.ne.s32.totalorder %s61, %s62
    %p74 = scmp.eq.s32.totalorder %s17, 1
    %p75 = por %p73, %p74
    %p77 = scmp.ne.s32.totalorder %s62, %s76
    %p78 = scmp.eq.s32.totalorder %s17, 0
    %p79 = por %p77, %p78
    %s81 = sadd.s32 %s80, 1
    %p84 = scmp.eq.s32.totalorder %s11, 1
    %p85 = scmp.ne.s32.totalorder %s80, %s82
    %p86 = scmp.eq.s32.totalorder %s11, 0
    %p87 = por %p85, %p86
    %p88 = scmp.ne.s32.totalorder %s80, %s82
    %p89 = scmp.eq.s32.totalorder %s16, 1
    %p90 = por %p88, %p89
    %p91 = scmp.ne.s32.totalorder %s82, %s83
    %p92 = scmp.eq.s32.totalorder %s16, 0
    %p93 = por %p91, %p92
    %p94 = scmp.ne.s32.totalorder %s82, %s83
    %p95 = scmp.eq.s32.totalorder %s17, 1
    %p96 = por %p94, %p95
    %p98 = scmp.ne.s32.totalorder %s83, %s97
    %p99 = scmp.eq.s32.totalorder %s17, 0
    %p100 = por %p98, %p99
    %s102 = sadd.s32 %s101, 1
    %p105 = scmp.eq.s32.totalorder %s11, 1
    %p106 = scmp.ne.s32.totalorder %s101, %s103
    %p107 = scmp.eq.s32.totalorder %s11, 0
    %p108 = por %p106, %p107
    %p109 = scmp.ne.s32.totalorder %s101, %s103
    %p110 = scmp.eq.s32.totalorder %s16, 1
    %p111 = por %p109, %p110
    %p112 = scmp.ne.s32.totalorder %s103, %s104
    %p113 = scmp.eq.s32.totalorder %s16, 0
    %p114 = por %p112, %p113
    %p115 = scmp.ne.s32.totalorder %s103, %s104
    %p116 = scmp.eq.s32.totalorder %s17, 1
    %p117 = por %p115, %p116
    %p119 = scmp.ne.s32.totalorder %s104, %s118
    %p120 = scmp.eq.s32.totalorder %s17, 0
    %p121 = por %p119, %p120
    %s122 = ssub.s32 %s18, %s30
    %s123 = ssub.s32 %s19, %s26
    %s124 = sor.u32 %s122, %s123
    %p125 = scmp.eq.s32.totalorder %s124, 0
    %s127 = sadd.s32 %s126, 1
    %s128 = scalar_select %p125, %s126, %s127
    %p131 = pneg %p125
    %p132 = scmp.eq.s32.totalorder %s11, 1
    %p133 = por %p131, %p132
    %p134 = scmp.ne.s32.totalorder %s126, %s129
    %p135 = scmp.eq.s32.totalorder %s11, 0
    %p136 = por %p134, %p135
    %p137 = scmp.ne.s32.totalorder %s126, %s129
    %p138 = scmp.eq.s32.totalorder %s16, 1
    %p139 = por %p137, %p138
    %p140 = scmp.ne.s32.totalorder %s129, %s130
    %p141 = scmp.eq.s32.totalorder %s16, 0
    %p142 = por %p140, %p141
    %p143 = scmp.ne.s32.totalorder %s129, %s130
    %p144 = scmp.eq.s32.totalorder %s17, 1
    %p145 = por %p143, %p144
    %p147 = scmp.ne.s32.totalorder %s130, %s146
    %p148 = scmp.eq.s32.totalorder %s17, 0
    %p149 = por %p147, %p148
    %p150 = scmp.le.s32.totalorder 1, %s11
    %p151 = scmp.lt.s32.totalorder %s11, 3
    %p152 = pnand %p150, %p151
    %p153 = pneg %p152
    // Predicated region
    $region9: #{_lambda_.1} parent=5 // pred_check
      _
    $region10: #{_lambda_.1} parent=5 // pred_check_branch
      %155 = sbr.rel (%p152) target = $region12
    $region11: #{_lambda_.1} parent=5 // pred_region
      %s156 = ssub.s32 %s11, 1
      // Predicated region
      $region13: #{_lambda_.1} parent=11 // pred_check
        %p157 = pneg %p72
      $region14: #{_lambda_.1} parent=11 // pred_check_branch
        %159 = sbr.rel (%p157) target = $region16
      $region15: #{_lambda_.1} parent=11 // pred_region
        _
      $region16: #{_lambda_.1} parent=11 // pred_fallthru
        _
      // Predicated region
      $region17: #{_lambda_.1} parent=11 // pred_check
        %p160 = pneg %p93
      $region18: #{_lambda_.1} parent=11 // pred_check_branch
        %162 = sbr.rel (%p160) target = $region20
      $region19: #{_lambda_.1} parent=11 // pred_region
        _
      $region20: #{_lambda_.1} parent=11 // pred_fallthru
        _
      // Predicated region
      $region21: #{_lambda_.1} parent=11 // pred_check
        %p163 = pneg %p114
      $region22: #{_lambda_.1} parent=11 // pred_check_branch
        %165 = sbr.rel (%p163) target = $region24
      $region23: #{_lambda_.1} parent=11 // pred_region
        _
      $region24: #{_lambda_.1} parent=11 // pred_fallthru
        _
    $region12: #{_lambda_.1} parent=5 // pred_fallthru
      _
    %p166 = scmp.lt.s32.totalorder %s11, 2
    // Predicated region
    $region25: #{_lambda_.1} parent=5 // pred_check
      %p167 = pneg %p166
    $region26: #{_lambda_.1} parent=5 // pred_check_branch
      %169 = sbr.rel (%p167) target = $region28
    $region27: #{_lambda_.1} parent=5 // pred_region
      // Predicated region
      $region29: #{_lambda_.1} parent=27 // pred_check
        %p170 = pneg %p45
      $region30: #{_lambda_.1} parent=27 // pred_check_branch
        %172 = sbr.rel (%p170) target = $region32
      $region31: #{_lambda_.1} parent=27 // pred_region
        %p173 = scmp.lt.s32.totalorder %s18, 1
        %s174 = scalar_select %p173, %s18, 1
        %p175 = scmp.lt.s32.totalorder %s19, 0
        %s176 = scalar_select %p175, %s19, 0
        %s177 = smul.addr %s176, 36
        %s178 = smul.addr %s174, 36
        %s179 = sadd.s32 %s177, %s178
        %s180 = smul.addr %s179, 4
        %s181 = scalar_lea.vmem %s0, %s180
      $region32: #{_lambda_.1} parent=27 // pred_fallthru
        _
    $region28: #{_lambda_.1} parent=5 // pred_fallthru
      _
    %p182 = scmp.le.s32.totalorder 1, %s11
    %p183 = scmp.lt.s32.totalorder %s11, 3
    %p184 = pnand %p182, %p183
    %p185 = pneg %p184
    // Predicated region
    $region33: #{_lambda_.1} parent=5 // pred_check
      _
    $region34: #{_lambda_.1} parent=5 // pred_check_branch
      %187 = sbr.rel (%p184) target = $region36
    $region35: #{_lambda_.1} parent=5 // pred_region
      %s188 = ssub.s32 %s11, 1
      %p189 = scmp.lt.s32.totalorder %s20, 1
      %s190 = scalar_select %p189, %s20, 1
      %p191 = scmp.lt.s32.totalorder %s21, 0
      %s192 = scalar_select %p191, %s21, 0
      %s193 = smul.addr %s192, 36
      %s194 = smul.addr %s190, 36
      %s195 = sadd.s32 %s193, %s194
      %s196 = smul.addr %s195, 4
      %s197 = scalar_lea.vmem %s0, %s196
      %p198 = pneg %p51
      %p199 = pneg %p48
      %p200 = pneg %p72
      %p201 = pneg %p69
      %p202 = pneg %p93
      %p203 = pneg %p90
      %p204 = pneg %p114
      %p205 = pneg %p111
      %p206 = pneg %p142
      %p207 = pneg %p139
      %s208 = smul.u32 2, %s21
      %p209 = scmp.lt.s32.totalorder %s20, 1
      %s210 = scalar_select %p209, %s20, 1
      %p211 = scmp.lt.s32.totalorder %s208, 1
      %s212 = scalar_select %p211, %s208, 1
      %s213 = smul.addr %s210, 2
      %s214 = sadd.s32 %s212, %s213
      %s215 = smul.addr %s214, 8
      %s216 = scalar_lea.vmem %s4, %s215
      %p217 = scmp.lt.s32.totalorder %s20, 1
      %s218 = scalar_select %p217, %s20, 1
      %p219 = scmp.lt.s32.totalorder %s21, 0
      %s220 = scalar_select %p219, %s21, 0
      %s221 = smul.addr %s220, 36
      %s222 = smul.addr %s218, 36
      %s223 = sadd.s32 %s221, %s222
      %s224 = smul.addr %s223, 4
      %s225 = scalar_lea.vmem %s0, %s224
      %s226 = smul.u32 2, %s21
      %p227 = scmp.lt.s32.totalorder %s20, 1
      %s228 = scalar_select %p227, %s20, 1
      %p229 = scmp.lt.s32.totalorder %s226, 1
      %s230 = scalar_select %p229, %s226, 1
      %s231 = smul.addr %s228, 2
      %s232 = sadd.s32 %s230, %s231
      %s233 = smul.addr %s232, 8
      %s234 = scalar_lea.vmem %s4, %s233
      %s235 = smul.u32 2, %s21
      %v237 = vld [vmem:[%s225] sm:$0xf]
      %v238 = vld [vmem:[%s225 + $0x4] sm:$0xf]
      %v239 = vld [vmem:[%s225 + $0x8] sm:$0xf]
      %v240 = vld [vmem:[%s225 + $0xc] sm:$0xf]
      %v241 = vld [vmem:[%s225 + $0x10] sm:$0xf]
      %v242 = vld [vmem:[%s225 + $0x14] sm:$0xf]
      %v243 = vld [vmem:[%s225 + $0x18] sm:$0xf]
      %v244 = vld [vmem:[%s225 + $0x1c] sm:$0xf]
      %v245 = vld [vmem:[%s225 + $0x20] sm:$0xf]
      %v246 = vld [vmem:[%s225 + $0x24] sm:$0xf]
      %v247 = vld [vmem:[%s225 + $0x28] sm:$0xf]
      %v248 = vld [vmem:[%s225 + $0x2c] sm:$0xf]
      %v249 = vld [vmem:[%s225 + $0x30] sm:$0xf]
      %v250 = vld [vmem:[%s225 + $0x34] sm:$0xf]
      %v251 = vld [vmem:[%s225 + $0x38] sm:$0xf]
      %v252 = vld [vmem:[%s225 + $0x3c] sm:$0xf]
      %v253 = vld [vmem:[%s225 + $0x40] sm:$0xf]
      %v254 = vld [vmem:[%s225 + $0x44] sm:$0xf]
      %v255 = vld [vmem:[%s225 + $0x48] sm:$0xf]
      %v256 = vld [vmem:[%s225 + $0x4c] sm:$0xf]
      %v257 = vld [vmem:[%s225 + $0x50] sm:$0xf]
      %v258 = vld [vmem:[%s225 + $0x54] sm:$0xf]
      %v259 = vld [vmem:[%s225 + $0x58] sm:$0xf]
      %v260 = vld [vmem:[%s225 + $0x5c] sm:$0xf]
      %v261 = vld [vmem:[%s225 + $0x60] sm:$0xf]
      %v262 = vld [vmem:[%s225 + $0x64] sm:$0xf]
      %v263 = vld [vmem:[%s225 + $0x68] sm:$0xf]
      %v264 = vld [vmem:[%s225 + $0x6c] sm:$0xf]
      %v265 = vld [vmem:[%s225 + $0x70] sm:$0xf]
      %v266 = vld [vmem:[%s225 + $0x74] sm:$0xf]
      %v267 = vld [vmem:[%s225 + $0x78] sm:$0xf]
      %v268 = vld [vmem:[%s225 + $0x7c] sm:$0xf]
      %v269 = vld [vmem:[%s1] sm:$0xf]
      %v270 = vld [vmem:[%s1 + $0x4] sm:$0x3]
      %v303 = vunpack.c.l.b16 %v237
      %v304 = vunpack.c.l.b16 %v238
      %v305 = vunpack.c.l.b16 %v239
      %v306 = vunpack.c.l.b16 %v240
      %v307 = vunpack.c.l.b16 %v241
      %v308 = vunpack.c.l.b16 %v242
      %v309 = vunpack.c.l.b16 %v243
      %v310 = vunpack.c.l.b16 %v244
      %v311 = vunpack.c.l.b16 %v245
      %v312 = vunpack.c.l.b16 %v246
      %v313 = vunpack.c.l.b16 %v247
      %v314 = vunpack.c.l.b16 %v248
      %v315 = vunpack.c.l.b16 %v249
      %v316 = vunpack.c.l.b16 %v250
      %v317 = vunpack.c.l.b16 %v251
      %v318 = vunpack.c.l.b16 %v252
      %v319 = vunpack.c.l.b16 %v253
      %v320 = vunpack.c.l.b16 %v254
      %v321 = vunpack.c.l.b16 %v255
      %v322 = vunpack.c.l.b16 %v256
      %v323 = vunpack.c.l.b16 %v257
      %v324 = vunpack.c.l.b16 %v258
      %v325 = vunpack.c.l.b16 %v259
      %v326 = vunpack.c.l.b16 %v260
      %v327 = vunpack.c.l.b16 %v261
      %v328 = vunpack.c.l.b16 %v262
      %v329 = vunpack.c.l.b16 %v263
      %v330 = vunpack.c.l.b16 %v264
      %v331 = vunpack.c.l.b16 %v265
      %v332 = vunpack.c.l.b16 %v266
      %v333 = vunpack.c.l.b16 %v267
      %v334 = vunpack.c.l.b16 %v268
      %v335 = vpack.c.b16 %v304, %v303
      %v336 = vpack.c.b16 %v306, %v305
      %v337 = vpack.c.b16 %v308, %v307
      %v338 = vpack.c.b16 %v310, %v309
      %v339 = vpack.c.b16 %v312, %v311
      %v340 = vpack.c.b16 %v314, %v313
      %v341 = vpack.c.b16 %v316, %v315
      %v342 = vpack.c.b16 %v318, %v317
      %v343 = vpack.c.b16 %v320, %v319
      %v344 = vpack.c.b16 %v322, %v321
      %v345 = vpack.c.b16 %v324, %v323
      %v346 = vpack.c.b16 %v326, %v325
      %v347 = vpack.c.b16 %v328, %v327
      %v348 = vpack.c.b16 %v330, %v329
      %v349 = vpack.c.b16 %v332, %v331
      %v350 = vpack.c.b16 %v334, %v333
      %v353 = vunpack.c.l.b16 %v269
      %v354 = vunpack.c.l.b16 %v270
      %v355 = vpack.c.b16 %v354, %v353
      %vm356 = vcmask 97280
      %v358 = vsel %vm356, %v335, 0
      %v361 = vsel %vm356, %v336, 0
      %v364 = vsel %vm356, %v337, 0
      %v367 = vsel %vm356, %v338, 0
      %v370 = vsel %vm356, %v339, 0
      %v373 = vsel %vm356, %v340, 0
      %v376 = vsel %vm356, %v341, 0
      %v379 = vsel %vm356, %v342, 0
      %v382 = vsel %vm356, %v343, 0
      %v385 = vsel %vm356, %v344, 0
      %v388 = vsel %vm356, %v345, 0
      %v391 = vsel %vm356, %v346, 0
      %v394 = vsel %vm356, %v347, 0
      %v397 = vsel %vm356, %v348, 0
      %v400 = vsel %vm356, %v349, 0
      %v403 = vsel %vm356, %v350, 0
      %vm405 = vcmask 1045504
      %v407 = vsel %vm405, %v355, 0
      %409 = vmatprep.subr.bf16.mxu0 0
      %410 = vmatpush1.bf16.msra.mxu0 %v407
      %411 = vmatprep.subr.bf16.mxu0 0
      %412 = vmatpush1.bf16.msra.mxu0 0
      %413 = vmatprep.subr.bf16.mxu0 0
      %414 = vmatpush1.bf16.msra.mxu0 0
      %415 = vmatprep.subr.bf16.mxu0 0
      %416 = vmatpush1.bf16.msra.mxu0 0
      %417 = vmatprep.subr.bf16.mxu0 0
      %418 = vmatpush1.bf16.msra.mxu0 0
      %419 = vmatprep.subr.bf16.mxu0 0
      %420 = vmatpush1.bf16.msra.mxu0 0
      %421 = vmatprep.subr.bf16.mxu0 0
      %422 = vmatpush1.bf16.msra.mxu0 0
      %423 = vmatprep.subr.bf16.mxu0 0
      %424 = vmatpush1.bf16.msra.mxu0 0
      %425 = vmatprep.subr.bf16.mxu0 0
      %426 = vmatpush1.bf16.msra.mxu0 0
      %427 = vmatprep.subr.bf16.mxu0 0
      %428 = vmatpush1.bf16.msra.mxu0 0
      %429 = vmatprep.subr.bf16.mxu0 0
      %430 = vmatpush1.bf16.msra.mxu0 0
      %431 = vmatprep.subr.bf16.mxu0 0
      %432 = vmatpush1.bf16.msra.mxu0 0
      %433 = vmatprep.subr.bf16.mxu0 0
      %434 = vmatpush1.bf16.msra.mxu0 0
      %435 = vmatprep.subr.bf16.mxu0 0
      %436 = vmatpush1.bf16.msra.mxu0 0
      %437 = vmatprep.subr.bf16.mxu0 0
      %438 = vmatpush1.bf16.msra.mxu0 0
      %439 = vmatprep.subr.bf16.mxu0 0
      %440 = vmatpush1.bf16.msra.mxu0 0
      %441 = vmatprep.mubr.bf16.mxu0 0
      %442 = vmatmul.mubr.bf16.gmra.mrb[0].mxu0 %v358
      %v443 = vpop.f32.mrb[0].mxu0
      %v444 = vadd.f32 0.0, %v443
      %v445 = vpop.f32.mrb[0].mxu0
      %v446 = vpop.f32.mrb[0].mxu0
      %v447 = vadd.f32 0.0, %v446
      %v448 = vpop.f32.mrb[0].mxu0
      %449 = vmatprep.mubr.bf16.mxu0 0
      %450 = vmatmul.mubr.bf16.gmra.mrb[0].mxu0 %v361
      %v451 = vpop.f32.mrb[0].mxu0
      %v452 = vadd.f32 0.0, %v451
      %v453 = vpop.f32.mrb[0].mxu0
      %v454 = vpop.f32.mrb[0].mxu0
      %v455 = vadd.f32 0.0, %v454
      %v456 = vpop.f32.mrb[0].mxu0
      %457 = vmatprep.mubr.bf16.mxu0 0
      %458 = vmatmul.mubr.bf16.gmra.mrb[0].mxu0 %v364
      %v459 = vpop.f32.mrb[0].mxu0
      %v460 = vadd.f32 0.0, %v459
      %v461 = vpop.f32.mrb[0].mxu0
      %v462 = vpop.f32.mrb[0].mxu0
      %v463 = vadd.f32 0.0, %v462
      %v464 = vpop.f32.mrb[0].mxu0
      %465 = vmatprep.mubr.bf16.mxu0 0
      %466 = vmatmul.mubr.bf16.gmra.mrb[0].mxu0 %v367
      %v467 = vpop.f32.mrb[0].mxu0
      %v468 = vadd.f32 0.0, %v467
      %v469 = vpop.f32.mrb[0].mxu0
      %v470 = vpop.f32.mrb[0].mxu0
      %v471 = vadd.f32 0.0, %v470
      %v472 = vpop.f32.mrb[0].mxu0
      %473 = vmatprep.mubr.bf16.mxu0 0
      %474 = vmatmul.mubr.bf16.gmra.mrb[0].mxu0 %v370
      %v475 = vpop.f32.mrb[0].mxu0
      %v476 = vadd.f32 0.0, %v475
      %v477 = vpop.f32.mrb[0].mxu0
      %v478 = vpop.f32.mrb[0].mxu0
      %v479 = vadd.f32 0.0, %v478
      %v480 = vpop.f32.mrb[0].mxu0
      %481 = vmatprep.mubr.bf16.mxu0 0
      %482 = vmatmul.mubr.bf16.gmra.mrb[0].mxu0 %v373
      %v483 = vpop.f32.mrb[0].mxu0
      %v484 = vadd.f32 0.0, %v483
      %v485 = vpop.f32.mrb[0].mxu0
      %v486 = vpop.f32.mrb[0].mxu0
      %v487 = vadd.f32 0.0, %v486
      %v488 = vpop.f32.mrb[0].mxu0
      %489 = vmatprep.mubr.bf16.mxu0 0
      %490 = vmatmul.mubr.bf16.gmra.mrb[0].mxu0 %v376
      %v491 = vpop.f32.mrb[0].mxu0
      %v492 = vadd.f32 0.0, %v491
      %v493 = vpop.f32.mrb[0].mxu0
      %v494 = vpop.f32.mrb[0].mxu0
      %v495 = vadd.f32 0.0, %v494
      %v496 = vpop.f32.mrb[0].mxu0
      %497 = vmatprep.mubr.bf16.mxu0 0
      %498 = vmatmul.mubr.bf16.gmra.mrb[0].mxu0 %v379
      %v499 = vpop.f32.mrb[0].mxu0
      %v500 = vadd.f32 0.0, %v499
      %v501 = vpop.f32.mrb[0].mxu0
      %v502 = vpop.f32.mrb[0].mxu0
      %v503 = vadd.f32 0.0, %v502
      %v504 = vpop.f32.mrb[0].mxu0
      %505 = vmatprep.mubr.bf16.mxu0 0
      %506 = vmatmul.mubr.bf16.gmra.mrb[0].mxu0 %v382
      %v507 = vpop.f32.mrb[0].mxu0
      %v508 = vadd.f32 0.0, %v507
      %v509 = vpop.f32.mrb[0].mxu0
      %v510 = vpop.f32.mrb[0].mxu0
      %v511 = vadd.f32 0.0, %v510
      %v512 = vpop.f32.mrb[0].mxu0
      %513 = vmatprep.mubr.bf16.mxu0 0
      %514 = vmatmul.mubr.bf16.gmra.mrb[0].mxu0 %v385
      %v515 = vpop.f32.mrb[0].mxu0
      %v516 = vadd.f32 0.0, %v515
      %v517 = vpop.f32.mrb[0].mxu0
      %v518 = vpop.f32.mrb[0].mxu0
      %v519 = vadd.f32 0.0, %v518
      %v520 = vpop.f32.mrb[0].mxu0
      %521 = vmatprep.mubr.bf16.mxu0 0
      %522 = vmatmul.mubr.bf16.gmra.mrb[0].mxu0 %v388
      %v523 = vpop.f32.mrb[0].mxu0
      %v524 = vadd.f32 0.0, %v523
      %v525 = vpop.f32.mrb[0].mxu0
      %v526 = vpop.f32.mrb[0].mxu0
      %v527 = vadd.f32 0.0, %v526
      %v528 = vpop.f32.mrb[0].mxu0
      %529 = vmatprep.mubr.bf16.mxu0 0
      %530 = vmatmul.mubr.bf16.gmra.mrb[0].mxu0 %v391
      %v531 = vpop.f32.mrb[0].mxu0
      %v532 = vadd.f32 0.0, %v531
      %v533 = vpop.f32.mrb[0].mxu0
      %v534 = vpop.f32.mrb[0].mxu0
      %v535 = vadd.f32 0.0, %v534
      %v536 = vpop.f32.mrb[0].mxu0
      %537 = vmatprep.mubr.bf16.mxu0 0
      %538 = vmatmul.mubr.bf16.gmra.mrb[0].mxu0 %v394
      %v539 = vpop.f32.mrb[0].mxu0
      %v540 = vadd.f32 0.0, %v539
      %v541 = vpop.f32.mrb[0].mxu0
      %v542 = vpop.f32.mrb[0].mxu0
      %v543 = vadd.f32 0.0, %v542
      %v544 = vpop.f32.mrb[0].mxu0
      %545 = vmatprep.mubr.bf16.mxu0 0
      %546 = vmatmul.mubr.bf16.gmra.mrb[0].mxu0 %v397
      %v547 = vpop.f32.mrb[0].mxu0
      %v548 = vadd.f32 0.0, %v547
      %v549 = vpop.f32.mrb[0].mxu0
      %v550 = vpop.f32.mrb[0].mxu0
      %v551 = vadd.f32 0.0, %v550
      %v552 = vpop.f32.mrb[0].mxu0
      %553 = vmatprep.mubr.bf16.mxu0 0
      %554 = vmatmul.mubr.bf16.gmra.mrb[0].mxu0 %v400
      %v555 = vpop.f32.mrb[0].mxu0
      %v556 = vadd.f32 0.0, %v555
      %v557 = vpop.f32.mrb[0].mxu0
      %v558 = vpop.f32.mrb[0].mxu0
      %v559 = vadd.f32 0.0, %v558
      %v560 = vpop.f32.mrb[0].mxu0
      %561 = vmatprep.mubr.bf16.mxu0 0
      %562 = vmatmul.mubr.bf16.gmra.mrb[0].mxu0 %v403
      %v563 = vpop.f32.mrb[0].mxu0
      %v564 = vadd.f32 0.0, %v563
      %v565 = vpop.f32.mrb[0].mxu0
      %v566 = vpop.f32.mrb[0].mxu0
      %v567 = vadd.f32 0.0, %v566
      %v568 = vpop.f32.mrb[0].mxu0
      %569 = vdwg.mxu0
      %570 = vst [vmem:[#allocation2] sm:$0xff] %v444
      %571 = vst [vmem:[#allocation2 + $0x8] sm:$0xff] %v447
      %572 = vst [vmem:[#allocation2 + $0x10] sm:$0xff] %v452
      %573 = vst [vmem:[#allocation2 + $0x18] sm:$0xff] %v455
      %574 = vst [vmem:[#allocation2 + $0x20] sm:$0xff] %v460
      %575 = vst [vmem:[#allocation2 + $0x28] sm:$0xff] %v463
      %576 = vst [vmem:[#allocation2 + $0x30] sm:$0xff] %v468
      %577 = vst [vmem:[#allocation2 + $0x38] sm:$0xff] %v471
      %578 = vst [vmem:[#allocation2 + $0x40] sm:$0xff] %v476
      %579 = vst [vmem:[#allocation2 + $0x48] sm:$0xff] %v479
      %580 = vst [vmem:[#allocation2 + $0x50] sm:$0xff] %v484
      %581 = vst [vmem:[#allocation2 + $0x58] sm:$0xff] %v487
      %582 = vst [vmem:[#allocation2 + $0x60] sm:$0xff] %v492
      %583 = vst [vmem:[#allocation2 + $0x68] sm:$0xff] %v495
      %584 = vst [vmem:[#allocation2 + $0x70] sm:$0xff] %v500
      %585 = vst [vmem:[#allocation2 + $0x78] sm:$0xff] %v503
      %586 = vst [vmem:[#allocation2 + $0x80] sm:$0xff] %v508
      %587 = vst [vmem:[#allocation2 + $0x88] sm:$0xff] %v511
      %588 = vst [vmem:[#allocation2 + $0x90] sm:$0xff] %v516
      %589 = vst [vmem:[#allocation2 + $0x98] sm:$0xff] %v519
      %590 = vst [vmem:[#allocation2 + $0xa0] sm:$0xff] %v524
      %591 = vst [vmem:[#allocation2 + $0xa8] sm:$0xff] %v527
      %592 = vst [vmem:[#allocation2 + $0xb0] sm:$0xff] %v532
      %593 = vst [vmem:[#allocation2 + $0xb8] sm:$0xff] %v535
      %594 = vst [vmem:[#allocation2 + $0xc0] sm:$0xff] %v540
      %595 = vst [vmem:[#allocation2 + $0xc8] sm:$0xff] %v543
      %596 = vst [vmem:[#allocation2 + $0xd0] sm:$0xff] %v548
      %597 = vst [vmem:[#allocation2 + $0xd8] sm:$0xff] %v551
      %598 = vst [vmem:[#allocation2 + $0xe0] sm:$0xff] %v556
      %599 = vst [vmem:[#allocation2 + $0xe8] sm:$0xff] %v559
      %600 = vst [vmem:[#allocation2 + $0xf0] sm:$0xff] %v564
      %601 = vst [vmem:[#allocation2 + $0xf8] sm:$0xff] %v567
      %v602 = vld [vmem:[%s225 + $0x8] sm:$0xf]
      %v603 = vld [vmem:[%s225 + $0xc] sm:$0xf]
      %v604 = vld [vmem:[%s225 + $0x10] sm:$0xf]
      %v605 = vld [vmem:[%s225 + $0x14] sm:$0xf]
      %v606 = vld [vmem:[%s225 + $0x18] sm:$0xf]
      %v607 = vld [vmem:[%s225 + $0x1c] sm:$0xf]
      %v608 = vld [vmem:[%s225 + $0x20] sm:$0xf]
      %v609 = vld [vmem:[%s225 + $0x24] sm:$0xf]
      %v610 = vld [vmem:[%s225 + $0x28] sm:$0xf]
      %v611 = vld [vmem:[%s225 + $0x2c] sm:$0xf]
      %v612 = vld [vmem:[%s225 + $0x30] sm:$0xf]
      %v613 = vld [vmem:[%s225 + $0x34] sm:$0xf]
      %v614 = vld [vmem:[%s225 + $0x38] sm:$0xf]
      %v615 = vld [vmem:[%s225 + $0x3c] sm:$0xf]
      %v616 = vld [vmem:[%s225 + $0x40] sm:$0xf]
      %v617 = vld [vmem:[%s225 + $0x44] sm:$0xf]
      %v618 = vld [vmem:[%s225 + $0x48] sm:$0xf]
      %v619 = vld [vmem:[%s225 + $0x4c] sm:$0xf]
      %v620 = vld [vmem:[%s225 + $0x50] sm:$0xf]
      %v621 = vld [vmem:[%s225 + $0x54] sm:$0xf]
      %v622 = vld [vmem:[%s225 + $0x58] sm:$0xf]
      %v623 = vld [vmem:[%s225 + $0x5c] sm:$0xf]
      %v624 = vld [vmem:[%s225 + $0x60] sm:$0xf]
      %v625 = vld [vmem:[%s225 + $0x64] sm:$0xf]
      %v626 = vld [vmem:[%s225 + $0x68] sm:$0xf]
      %v627 = vld [vmem:[%s225 + $0x6c] sm:$0xf]
      %v628 = vld [vmem:[%s225 + $0x70] sm:$0xf]
      %v629 = vld [vmem:[%s225 + $0x74] sm:$0xf]
      %v630 = vld [vmem:[%s225 + $0x78] sm:$0xf]
      %v631 = vld [vmem:[%s225 + $0x7c] sm:$0xf]
      %v632 = vld [vmem:[%s225 + $0x80] sm:$0xf]
      %v633 = vld [vmem:[%s225 + $0x84] sm:$0xf]
      %v634 = vld [vmem:[#allocation2] sm:$0xff]
      %v635 = vld [vmem:[#allocation2 + $0x8] sm:$0xff]
      %v636 = vld [vmem:[#allocation2 + $0x10] sm:$0xff]
      %v637 = vld [vmem:[#allocation2 + $0x18] sm:$0xff]
      %v638 = vld [vmem:[#allocation2 + $0x20] sm:$0xff]
      %v639 = vld [vmem:[#allocation2 + $0x28] sm:$0xff]
      %v640 = vld [vmem:[#allocation2 + $0x30] sm:$0xff]
      %v641 = vld [vmem:[#allocation2 + $0x38] sm:$0xff]
      %v642 = vld [vmem:[#allocation2 + $0x40] sm:$0xff]
      %v643 = vld [vmem:[#allocation2 + $0x48] sm:$0xff]
      %v644 = vld [vmem:[#allocation2 + $0x50] sm:$0xff]
      %v645 = vld [vmem:[#allocation2 + $0x58] sm:$0xff]
      %v646 = vld [vmem:[#allocation2 + $0x60] sm:$0xff]
      %v647 = vld [vmem:[#allocation2 + $0x68] sm:$0xff]
      %v648 = vld [vmem:[#allocation2 + $0x70] sm:$0xff]
      %v649 = vld [vmem:[#allocation2 + $0x78] sm:$0xff]
      %v650 = vld [vmem:[#allocation2 + $0x80] sm:$0xff]
      %v651 = vld [vmem:[#allocation2 + $0x88] sm:$0xff]
      %v652 = vld [vmem:[#allocation2 + $0x90] sm:$0xff]
      %v653 = vld [vmem:[#allocation2 + $0x98] sm:$0xff]
      %v654 = vld [vmem:[#allocation2 + $0xa0] sm:$0xff]
      %v655 = vld [vmem:[#allocation2 + $0xa8] sm:$0xff]
      %v656 = vld [vmem:[#allocation2 + $0xb0] sm:$0xff]
      %v657 = vld [vmem:[#allocation2 + $0xb8] sm:$0xff]
      %v658 = vld [vmem:[#allocation2 + $0xc0] sm:$0xff]
      %v659 = vld [vmem:[#allocation2 + $0xc8] sm:$0xff]
      %v660 = vld [vmem:[#allocation2 + $0xd0] sm:$0xff]
      %v661 = vld [vmem:[#allocation2 + $0xd8] sm:$0xff]
      %v662 = vld [vmem:[#allocation2 + $0xe0] sm:$0xff]
      %v663 = vld [vmem:[#allocation2 + $0xe8] sm:$0xff]
      %v664 = vld [vmem:[#allocation2 + $0xf0] sm:$0xff]
      %v665 = vld [vmem:[#allocation2 + $0xf8] sm:$0xff]
      %s666 = scalar_lea.vmem %s1, 8
      %v667 = vld [vmem:[%s666] sm:$0xf]
      %v668 = vld [vmem:[%s666 + $0x4] sm:$0x3]
      %v701 = vunpack.c.l.b16 %v602
      %v702 = vunpack.c.l.b16 %v603
      %v703 = vunpack.c.l.b16 %v604
      %v704 = vunpack.c.l.b16 %v605
      %v705 = vunpack.c.l.b16 %v606
      %v706 = vunpack.c.l.b16 %v607
      %v707 = vunpack.c.l.b16 %v608
      %v708 = vunpack.c.l.b16 %v609
      %v709 = vunpack.c.l.b16 %v610
      %v710 = vunpack.c.l.b16 %v611
      %v711 = vunpack.c.l.b16 %v612
      %v712 = vunpack.c.l.b16 %v613
      %v713 = vunpack.c.l.b16 %v614
      %v714 = vunpack.c.l.b16 %v615
      %v715 = vunpack.c.l.b16 %v616
      %v716 = vunpack.c.l.b16 %v617
      %v717 = vunpack.c.l.b16 %v618
      %v718 = vunpack.c.l.b16 %v619
      %v719 = vunpack.c.l.b16 %v620
      %v720 = vunpack.c.l.b16 %v621
      %v721 = vunpack.c.l.b16 %v622
      %v722 = vunpack.c.l.b16 %v623
      %v723 = vunpack.c.l.b16 %v624
      %v724 = vunpack.c.l.b16 %v625
      %v725 = vunpack.c.l.b16 %v626
      %v726 = vunpack.c.l.b16 %v627
      %v727 = vunpack.c.l.b16 %v628
      %v728 = vunpack.c.l.b16 %v629
      %v729 = vunpack.c.l.b16 %v630
      %v730 = vunpack.c.l.b16 %v631
      %v731 = vunpack.c.l.b16 %v632
      %v732 = vunpack.c.l.b16 %v633
      %v733 = vpack.c.b16 %v702, %v701
      %v734 = vpack.c.b16 %v704, %v703
      %v735 = vpack.c.b16 %v706, %v705
      %v736 = vpack.c.b16 %v708, %v707
      %v737 = vpack.c.b16 %v710, %v709
      %v738 = vpack.c.b16 %v712, %v711
      %v739 = vpack.c.b16 %v714, %v713
      %v740 = vpack.c.b16 %v716, %v715
      %v741 = vpack.c.b16 %v718, %v717
      %v742 = vpack.c.b16 %v720, %v719
      %v743 = vpack.c.b16 %v722, %v721
      %v744 = vpack.c.b16 %v724, %v723
      %v745 = vpack.c.b16 %v726, %v725
      %v746 = vpack.c.b16 %v728, %v727
      %v747 = vpack.c.b16 %v730, %v729
      %v748 = vpack.c.b16 %v732, %v731
      %v751 = vunpack.c.l.b16 %v667
      %v752 = vunpack.c.l.b16 %v668
      %v753 = vpack.c.b16 %v752, %v751
      %v755 = vsel %vm356, %v733, 0
      %v758 = vsel %vm356, %v734, 0
      %v761 = vsel %vm356, %v735, 0
      %v764 = vsel %vm356, %v736, 0
      %v767 = vsel %vm356, %v737, 0
      %v770 = vsel %vm356, %v738, 0
      %v773 = vsel %vm356, %v739, 0
      %v776 = vsel %vm356, %v740, 0
      %v779 = vsel %vm356, %v741, 0
      %v782 = vsel %vm356, %v742, 0
      %v785 = vsel %vm356, %v743, 0
      %v788 = vsel %vm356, %v744, 0
      %v791 = vsel %vm356, %v745, 0
      %v794 = vsel %vm356, %v746, 0
      %v797 = vsel %vm356, %v747, 0
      %v800 = vsel %vm356, %v748, 0
      %v803 = vsel %vm405, %v753, 0
      %805 = vmatprep.subr.bf16.mxu0 0
      %806 = vmatpush1.bf16.msra.mxu0 %v803
      %807 = vmatprep.subr.bf16.mxu0 0
      %808 = vmatpush1.bf16.msra.mxu0 0
      %809 = vmatprep.subr.bf16.mxu0 0
      %810 = vmatpush1.bf16.msra.mxu0 0
      %811 = vmatprep.subr.bf16.mxu0 0
      %812 = vmatpush1.bf16.msra.mxu0 0
      %813 = vmatprep.subr.bf16.mxu0 0
      %814 = vmatpush1.bf16.msra.mxu0 0
      %815 = vmatprep.subr.bf16.mxu0 0
      %816 = vmatpush1.bf16.msra.mxu0 0
      %817 = vmatprep.subr.bf16.mxu0 0
      %818 = vmatpush1.bf16.msra.mxu0 0
      %819 = vmatprep.subr.bf16.mxu0 0
      %820 = vmatpush1.bf16.msra.mxu0 0
      %821 = vmatprep.subr.bf16.mxu0 0
      %822 = vmatpush1.bf16.msra.mxu0 0
      %823 = vmatprep.subr.bf16.mxu0 0
      %824 = vmatpush1.bf16.msra.mxu0 0
      %825 = vmatprep.subr.bf16.mxu0 0
      %826 = vmatpush1.bf16.msra.mxu0 0
      %827 = vmatprep.subr.bf16.mxu0 0
      %828 = vmatpush1.bf16.msra.mxu0 0
      %829 = vmatprep.subr.bf16.mxu0 0
      %830 = vmatpush1.bf16.msra.mxu0 0
      %831 = vmatprep.subr.bf16.mxu0 0
      %832 = vmatpush1.bf16.msra.mxu0 0
      %833 = vmatprep.subr.bf16.mxu0 0
      %834 = vmatpush1.bf16.msra.mxu0 0
      %835 = vmatprep.subr.bf16.mxu0 0
      %836 = vmatpush1.bf16.msra.mxu0 0
      %837 = vmatprep.mubr.bf16.mxu0 0
      %838 = vmatmul.mubr.bf16.gmra.mrb[0].mxu0 %v755
      %v839 = vpop.f32.mrb[0].mxu0
      %v840 = vadd.f32 0.0, %v839
      %v841 = vpop.f32.mrb[0].mxu0
      %v842 = vpop.f32.mrb[0].mxu0
      %v843 = vadd.f32 0.0, %v842
      %v844 = vpop.f32.mrb[0].mxu0
      %845 = vmatprep.mubr.bf16.mxu0 0
      %846 = vmatmul.mubr.bf16.gmra.mrb[0].mxu0 %v758
      %v847 = vpop.f32.mrb[0].mxu0
      %v848 = vadd.f32 0.0, %v847
      %v849 = vpop.f32.mrb[0].mxu0
      %v850 = vpop.f32.mrb[0].mxu0
      %v851 = vadd.f32 0.0, %v850
      %v852 = vpop.f32.mrb[0].mxu0
      %853 = vmatprep.mubr.bf16.mxu0 0
      %854 = vmatmul.mubr.bf16.gmra.mrb[0].mxu0 %v761
      %v855 = vpop.f32.mrb[0].mxu0
      %v856 = vadd.f32 0.0, %v855
      %v857 = vpop.f32.mrb[0].mxu0
      %v858 = vpop.f32.mrb[0].mxu0
      %v859 = vadd.f32 0.0, %v858
      %v860 = vpop.f32.mrb[0].mxu0
      %861 = vmatprep.mubr.bf16.mxu0 0
      %862 = vmatmul.mubr.bf16.gmra.mrb[0].mxu0 %v764
      %v863 = vpop.f32.mrb[0].mxu0
      %v864 = vadd.f32 0.0, %v863
      %v865 = vpop.f32.mrb[0].mxu0
      %v866 = vpop.f32.mrb[0].mxu0
      %v867 = vadd.f32 0.0, %v866
      %v868 = vpop.f32.mrb[0].mxu0
      %869 = vmatprep.mubr.bf16.mxu0 0
      %870 = vmatmul.mubr.bf16.gmra.mrb[0].mxu0 %v767
      %v871 = vpop.f32.mrb[0].mxu0
      %v872 = vadd.f32 0.0, %v871
      %v873 = vpop.f32.mrb[0].mxu0
      %v874 = vpop.f32.mrb[0].mxu0
      %v875 = vadd.f32 0.0, %v874
      %v876 = vpop.f32.mrb[0].mxu0
      %877 = vmatprep.mubr.bf16.mxu0 0
      %878 = vmatmul.mubr.bf16.gmra.mrb[0].mxu0 %v770
      %v879 = vpop.f32.mrb[0].mxu0
      %v880 = vadd.f32 0.0, %v879
      %v881 = vpop.f32.mrb[0].mxu0
      %v882 = vpop.f32.mrb[0].mxu0
      %v883 = vadd.f32 0.0, %v882
      %v884 = vpop.f32.mrb[0].mxu0
      %885 = vmatprep.mubr.bf16.mxu0 0
      %886 = vmatmul.mubr.bf16.gmra.mrb[0].mxu0 %v773
      %v887 = vpop.f32.mrb[0].mxu0
      %v888 = vadd.f32 0.0, %v887
      %v889 = vpop.f32.mrb[0].mxu0
      %v890 = vpop.f32.mrb[0].mxu0
      %v891 = vadd.f32 0.0, %v890
      %v892 = vpop.f32.mrb[0].mxu0
      %893 = vmatprep.mubr.bf16.mxu0 0
      %894 = vmatmul.mubr.bf16.gmra.mrb[0].mxu0 %v776
      %v895 = vpop.f32.mrb[0].mxu0
      %v896 = vadd.f32 0.0, %v895
      %v897 = vpop.f32.mrb[0].mxu0
      %v898 = vpop.f32.mrb[0].mxu0
      %v899 = vadd.f32 0.0, %v898
      %v900 = vpop.f32.mrb[0].mxu0
      %901 = vmatprep.mubr.bf16.mxu0 0
      %902 = vmatmul.mubr.bf16.gmra.mrb[0].mxu0 %v779
      %v903 = vpop.f32.mrb[0].mxu0
      %v904 = vadd.f32 0.0, %v903
      %v905 = vpop.f32.mrb[0].mxu0
      %v906 = vpop.f32.mrb[0].mxu0
      %v907 = vadd.f32 0.0, %v906
      %v908 = vpop.f32.mrb[0].mxu0
      %909 = vmatprep.mubr.bf16.mxu0 0
      %910 = vmatmul.mubr.bf16.gmra.mrb[0].mxu0 %v782
      %v911 = vpop.f32.mrb[0].mxu0
      %v912 = vadd.f32 0.0, %v911
      %v913 = vpop.f32.mrb[0].mxu0
      %v914 = vpop.f32.mrb[0].mxu0
      %v915 = vadd.f32 0.0, %v914
      %v916 = vpop.f32.mrb[0].mxu0
      %917 = vmatprep.mubr.bf16.mxu0 0
      %918 = vmatmul.mubr.bf16.gmra.mrb[0].mxu0 %v785
      %v919 = vpop.f32.mrb[0].mxu0
      %v920 = vadd.f32 0.0, %v919
      %v921 = vpop.f32.mrb[0].mxu0
      %v922 = vpop.f32.mrb[0].mxu0
      %v923 = vadd.f32 0.0, %v922
      %v924 = vpop.f32.mrb[0].mxu0
      %925 = vmatprep.mubr.bf16.mxu0 0
      %926 = vmatmul.mubr.bf16.gmra.mrb[0].mxu0 %v788
      %v927 = vpop.f32.mrb[0].mxu0
      %v928 = vadd.f32 0.0, %v927
      %v929 = vpop.f32.mrb[0].mxu0
      %v930 = vpop.f32.mrb[0].mxu0
      %v931 = vadd.f32 0.0, %v930
      %v932 = vpop.f32.mrb[0].mxu0
      %933 = vmatprep.mubr.bf16.mxu0 0
      %934 = vmatmul.mubr.bf16.gmra.mrb[0].mxu0 %v791
      %v935 = vpop.f32.mrb[0].mxu0
      %v936 = vadd.f32 0.0, %v935
      %v937 = vpop.f32.mrb[0].mxu0
      %v938 = vpop.f32.mrb[0].mxu0
      %v939 = vadd.f32 0.0, %v938
      %v940 = vpop.f32.mrb[0].mxu0
      %941 = vmatprep.mubr.bf16.mxu0 0
      %942 = vmatmul.mubr.bf16.gmra.mrb[0].mxu0 %v794
      %v943 = vpop.f32.mrb[0].mxu0
      %v944 = vadd.f32 0.0, %v943
      %v945 = vpop.f32.mrb[0].mxu0
      %v946 = vpop.f32.mrb[0].mxu0
      %v947 = vadd.f32 0.0, %v946
      %v948 = vpop.f32.mrb[0].mxu0
      %949 = vmatprep.mubr.bf16.mxu0 0
      %950 = vmatmul.mubr.bf16.gmra.mrb[0].mxu0 %v797
      %v951 = vpop.f32.mrb[0].mxu0
      %v952 = vadd.f32 0.0, %v951
      %v953 = vpop.f32.mrb[0].mxu0
      %v954 = vpop.f32.mrb[0].mxu0
      %v955 = vadd.f32 0.0, %v954
      %v956 = vpop.f32.mrb[0].mxu0
      %957 = vmatprep.mubr.bf16.mxu0 0
      %958 = vmatmul.mubr.bf16.gmra.mrb[0].mxu0 %v800
      %v959 = vpop.f32.mrb[0].mxu0
      %v960 = vadd.f32 0.0, %v959
      %v961 = vpop.f32.mrb[0].mxu0
      %v962 = vpop.f32.mrb[0].mxu0
      %v963 = vadd.f32 0.0, %v962
      %v964 = vpop.f32.mrb[0].mxu0
      %965 = vdwg.mxu0
      %v966 = vadd.f32 %v634, %v840
      %v967 = vadd.f32 %v635, %v843
      %v968 = vadd.f32 %v636, %v848
      %v969 = vadd.f32 %v637, %v851
      %v970 = vadd.f32 %v638, %v856
      %v971 = vadd.f32 %v639, %v859
      %v972 = vadd.f32 %v640, %v864
      %v973 = vadd.f32 %v641, %v867
      %v974 = vadd.f32 %v642, %v872
      %v975 = vadd.f32 %v643, %v875
      %v976 = vadd.f32 %v644, %v880
      %v977 = vadd.f32 %v645, %v883
      %v978 = vadd.f32 %v646, %v888
      %v979 = vadd.f32 %v647, %v891
      %v980 = vadd.f32 %v648, %v896
      %v981 = vadd.f32 %v649, %v899
      %v982 = vadd.f32 %v650, %v904
      %v983 = vadd.f32 %v651, %v907
      %v984 = vadd.f32 %v652, %v912
      %v985 = vadd.f32 %v653, %v915
      %v986 = vadd.f32 %v654, %v920
      %v987 = vadd.f32 %v655, %v923
      %v988 = vadd.f32 %v656, %v928
      %v989 = vadd.f32 %v657, %v931
      %v990 = vadd.f32 %v658, %v936
      %v991 = vadd.f32 %v659, %v939
      %v992 = vadd.f32 %v660, %v944
      %v993 = vadd.f32 %v661, %v947
      %v994 = vadd.f32 %v662, %v952
      %v995 = vadd.f32 %v663, %v955
      %v996 = vadd.f32 %v664, %v960
      %v997 = vadd.f32 %v665, %v963
      %998 = vst [vmem:[#allocation2] sm:$0xff] %v966
      %999 = vst [vmem:[#allocation2 + $0x8] sm:$0xff] %v967
      %1000 = vst [vmem:[#allocation2 + $0x10] sm:$0xff] %v968
      %1001 = vst [vmem:[#allocation2 + $0x18] sm:$0xff] %v969
      %1002 = vst [vmem:[#allocation2 + $0x20] sm:$0xff] %v970
      %1003 = vst [vmem:[#allocation2 + $0x28] sm:$0xff] %v971
      %1004 = vst [vmem:[#allocation2 + $0x30] sm:$0xff] %v972
      %1005 = vst [vmem:[#allocation2 + $0x38] sm:$0xff] %v973
      %1006 = vst [vmem:[#allocation2 + $0x40] sm:$0xff] %v974
      %1007 = vst [vmem:[#allocation2 + $0x48] sm:$0xff] %v975
      %1008 = vst [vmem:[#allocation2 + $0x50] sm:$0xff] %v976
      %1009 = vst [vmem:[#allocation2 + $0x58] sm:$0xff] %v977
      %1010 = vst [vmem:[#allocation2 + $0x60] sm:$0xff] %v978
      %1011 = vst [vmem:[#allocation2 + $0x68] sm:$0xff] %v979
      %1012 = vst [vmem:[#allocation2 + $0x70] sm:$0xff] %v980
      %1013 = vst [vmem:[#allocation2 + $0x78] sm:$0xff] %v981
      %1014 = vst [vmem:[#allocation2 + $0x80] sm:$0xff] %v982
      %1015 = vst [vmem:[#allocation2 + $0x88] sm:$0xff] %v983
      %1016 = vst [vmem:[#allocation2 + $0x90] sm:$0xff] %v984
      %1017 = vst [vmem:[#allocation2 + $0x98] sm:$0xff] %v985
      %1018 = vst [vmem:[#allocation2 + $0xa0] sm:$0xff] %v986
      %1019 = vst [vmem:[#allocation2 + $0xa8] sm:$0xff] %v987
      %1020 = vst [vmem:[#allocation2 + $0xb0] sm:$0xff] %v988
      %1021 = vst [vmem:[#allocation2 + $0xb8] sm:$0xff] %v989
      %1022 = vst [vmem:[#allocation2 + $0xc0] sm:$0xff] %v990
      %1023 = vst [vmem:[#allocation2 + $0xc8] sm:$0xff] %v991
      %1024 = vst [vmem:[#allocation2 + $0xd0] sm:$0xff] %v992
      %1025 = vst [vmem:[#allocation2 + $0xd8] sm:$0xff] %v993
      %1026 = vst [vmem:[#allocation2 + $0xe0] sm:$0xff] %v994
      %1027 = vst [vmem:[#allocation2 + $0xe8] sm:$0xff] %v995
      %1028 = vst [vmem:[#allocation2 + $0xf0] sm:$0xff] %v996
      %1029 = vst [vmem:[#allocation2 + $0xf8] sm:$0xff] %v997
      %v1030 = vld [vmem:[%s225 + $0x10] sm:$0xf]
      %v1031 = vld [vmem:[%s225 + $0x14] sm:$0xf]
      %v1032 = vld [vmem:[%s225 + $0x18] sm:$0xf]
      %v1033 = vld [vmem:[%s225 + $0x1c] sm:$0xf]
      %v1034 = vld [vmem:[%s225 + $0x20] sm:$0xf]
      %v1035 = vld [vmem:[%s225 + $0x24] sm:$0xf]
      %v1036 = vld [vmem:[%s225 + $0x28] sm:$0xf]
      %v1037 = vld [vmem:[%s225 + $0x2c] sm:$0xf]
      %v1038 = vld [vmem:[%s225 + $0x30] sm:$0xf]
      %v1039 = vld [vmem:[%s225 + $0x34] sm:$0xf]
      %v1040 = vld [vmem:[%s225 + $0x38] sm:$0xf]
      %v1041 = vld [vmem:[%s225 + $0x3c] sm:$0xf]
      %v1042 = vld [vmem:[%s225 + $0x40] sm:$0xf]
      %v1043 = vld [vmem:[%s225 + $0x44] sm:$0xf]
      %v1044 = vld [vmem:[%s225 + $0x48] sm:$0xf]
      %v1045 = vld [vmem:[%s225 + $0x4c] sm:$0xf]
      %v1046 = vld [vmem:[%s225 + $0x50] sm:$0xf]
      %v1047 = vld [vmem:[%s225 + $0x54] sm:$0xf]
      %v1048 = vld [vmem:[%s225 + $0x58] sm:$0xf]
      %v1049 = vld [vmem:[%s225 + $0x5c] sm:$0xf]
      %v1050 = vld [vmem:[%s225 + $0x60] sm:$0xf]
      %v1051 = vld [vmem:[%s225 + $0x64] sm:$0xf]
      %v1052 = vld [vmem:[%s225 + $0x68] sm:$0xf]
      %v1053 = vld [vmem:[%s225 + $0x6c] sm:$0xf]
      %v1054 = vld [vmem:[%s225 + $0x70] sm:$0xf]
      %v1055 = vld [vmem:[%s225 + $0x74] sm:$0xf]
      %v1056 = vld [vmem:[%s225 + $0x78] sm:$0xf]
      %v1057 = vld [vmem:[%s225 + $0x7c] sm:$0xf]
      %v1058 = vld [vmem:[%s225 + $0x80] sm:$0xf]
      %v1059 = vld [vmem:[%s225 + $0x84] sm:$0xf]
      %v1060 = vld [vmem:[%s225 + $0x88] sm:$0xf]
      %v1061 = vld [vmem:[%s225 + $0x8c] sm:$0xf]
      %v1062 = vld [vmem:[#allocation2] sm:$0xff]
      %v1063 = vld [vmem:[#allocation2 + $0x8] sm:$0xff]
      %v1064 = vld [vmem:[#allocation2 + $0x10] sm:$0xff]
      %v1065 = vld [vmem:[#allocation2 + $0x18] sm:$0xff]
      %v1066 = vld [vmem:[#allocation2 + $0x20] sm:$0xff]
      %v1067 = vld [vmem:[#allocation2 + $0x28] sm:$0xff]
      %v1068 = vld [vmem:[#allocation2 + $0x30] sm:$0xff]
      %v1069 = vld [vmem:[#allocation2 + $0x38] sm:$0xff]
      %v1070 = vld [vmem:[#allocation2 + $0x40] sm:$0xff]
      %v1071 = vld [vmem:[#allocation2 + $0x48] sm:$0xff]
      %v1072 = vld [vmem:[#allocation2 + $0x50] sm:$0xff]
      %v1073 = vld [vmem:[#allocation2 + $0x58] sm:$0xff]
      %v1074 = vld [vmem:[#allocation2 + $0x60] sm:$0xff]
      %v1075 = vld [vmem:[#allocation2 + $0x68] sm:$0xff]
      %v1076 = vld [vmem:[#allocation2 + $0x70] sm:$0xff]
      %v1077 = vld [vmem:[#allocation2 + $0x78] sm:$0xff]
      %v1078 = vld [vmem:[#allocation2 + $0x80] sm:$0xff]
      %v1079 = vld [vmem:[#allocation2 + $0x88] sm:$0xff]
      %v1080 = vld [vmem:[#allocation2 + $0x90] sm:$0xff]
      %v1081 = vld [vmem:[#allocation2 + $0x98] sm:$0xff]
      %v1082 = vld [vmem:[#allocation2 + $0xa0] sm:$0xff]
      %v1083 = vld [vmem:[#allocation2 + $0xa8] sm:$0xff]
      %v1084 = vld [vmem:[#allocation2 + $0xb0] sm:$0xff]
      %v1085 = vld [vmem:[#allocation2 + $0xb8] sm:$0xff]
      %v1086 = vld [vmem:[#allocation2 + $0xc0] sm:$0xff]
      %v1087 = vld [vmem:[#allocation2 + $0xc8] sm:$0xff]
      %v1088 = vld [vmem:[#allocation2 + $0xd0] sm:$0xff]
      %v1089 = vld [vmem:[#allocation2 + $0xd8] sm:$0xff]
      %v1090 = vld [vmem:[#allocation2 + $0xe0] sm:$0xff]
      %v1091 = vld [vmem:[#allocation2 + $0xe8] sm:$0xff]
      %v1092 = vld [vmem:[#allocation2 + $0xf0] sm:$0xff]
      %v1093 = vld [vmem:[#allocation2 + $0xf8] sm:$0xff]
      %s1094 = scalar_lea.vmem %s1, 16
      %v1095 = vld [vmem:[%s1094] sm:$0xf]
      %v1096 = vld [vmem:[%s1094 + $0x4] sm:$0x3]
      %v1129 = vunpack.c.l.b16 %v1030
      %v1130 = vunpack.c.l.b16 %v1031
      %v1131 = vunpack.c.l.b16 %v1032
      %v1132 = vunpack.c.l.b16 %v1033
      %v1133 = vunpack.c.l.b16 %v1034
      %v1134 = vunpack.c.l.b16 %v1035
      %v1135 = vunpack.c.l.b16 %v1036
      %v1136 = vunpack.c.l.b16 %v1037
      %v1137 = vunpack.c.l.b16 %v1038
      %v1138 = vunpack.c.l.b16 %v1039
      %v1139 = vunpack.c.l.b16 %v1040
      %v1140 = vunpack.c.l.b16 %v1041
      %v1141 = vunpack.c.l.b16 %v1042
      %v1142 = vunpack.c.l.b16 %v1043
      %v1143 = vunpack.c.l.b16 %v1044
      %v1144 = vunpack.c.l.b16 %v1045
      %v1145 = vunpack.c.l.b16 %v1046
      %v1146 = vunpack.c.l.b16 %v1047
      %v1147 = vunpack.c.l.b16 %v1048
      %v1148 = vunpack.c.l.b16 %v1049
      %v1149 = vunpack.c.l.b16 %v1050
      %v1150 = vunpack.c.l.b16 %v1051
      %v1151 = vunpack.c.l.b16 %v1052
      %v1152 = vunpack.c.l.b16 %v1053
      %v1153 = vunpack.c.l.b16 %v1054
      %v1154 = vunpack.c.l.b16 %v1055
      %v1155 = vunpack.c.l.b16 %v1056
      %v1156 = vunpack.c.l.b16 %v1057
      %v1157 = vunpack.c.l.b16 %v1058
      %v1158 = vunpack.c.l.b16 %v1059
      %v1159 = vunpack.c.l.b16 %v1060
      %v1160 = vunpack.c.l.b16 %v1061
      %v1161 = vpack.c.b16 %v1130, %v1129
      %v1162 = vpack.c.b16 %v1132, %v1131
      %v1163 = vpack.c.b16 %v1134, %v1133
      %v1164 = vpack.c.b16 %v1136, %v1135
      %v1165 = vpack.c.b16 %v1138, %v1137
      %v1166 = vpack.c.b16 %v1140, %v1139
      %v1167 = vpack.c.b16 %v1142, %v1141
      %v1168 = vpack.c.b16 %v1144, %v1143
      %v1169 = vpack.c.b16 %v1146, %v1145
      %v1170 = vpack.c.b16 %v1148, %v1147
      %v1171 = vpack.c.b16 %v1150, %v1149
      %v1172 = vpack.c.b16 %v1152, %v1151
      %v1173 = vpack.c.b16 %v1154, %v1153
      %v1174 = vpack.c.b16 %v1156, %v1155
      %v1175 = vpack.c.b16 %v1158, %v1157
      %v1176 = vpack.c.b16 %v1160, %v1159
      %v1179 = vunpack.c.l.b16 %v1095
      %v1180 = vunpack.c.l.b16 %v1096
      %v1181 = vpack.c.b16 %v1180, %v1179
      %v1183 = vsel %vm356, %v1161, 0
      %v1186 = vsel %vm356, %v1162, 0
      %v1189 = vsel %vm356, %v1163, 0
      %v1192 = vsel %vm356, %v1164, 0
      %v1195 = vsel %vm356, %v1165, 0
      %v1198 = vsel %vm356, %v1166, 0
      %v1201 = vsel %vm356, %v1167, 0
      %v1204 = vsel %vm356, %v1168, 0
      %v1207 = vsel %vm356, %v1169, 0
      %v1210 = vsel %vm356, %v1170, 0
      %v1213 = vsel %vm356, %v1171, 0
      %v1216 = vsel %vm356, %v1172, 0
      %v1219 = vsel %vm356, %v1173, 0
      %v1222 = vsel %vm356, %v1174, 0
      %v1225 = vsel %vm356, %v1175, 0
      %v1228 = vsel %vm356, %v1176, 0
      %v1231 = vsel %vm405, %v1181, 0
      %1233 = vmatprep.subr.bf16.mxu0 0
      %1234 = vmatpush1.bf16.msra.mxu0 %v1231
      %1235 = vmatprep.subr.bf16.mxu0 0
      %1236 = vmatpush1.bf16.msra.mxu0 0
      %1237 = vmatprep.subr.bf16.mxu0 0
      %1238 = vmatpush1.bf16.msra.mxu0 0
      %1239 = vmatprep.subr.bf16.mxu0 0
      %1240 = vmatpush1.bf16.msra.mxu0 0
      %1241 = vmatprep.subr.bf16.mxu0 0
      %1242 = vmatpush1.bf16.msra.mxu0 0
      %1243 = vmatprep.subr.bf16.mxu0 0
      %1244 = vmatpush1.bf16.msra.mxu0 0
      %1245 = vmatprep.subr.bf16.mxu0 0
      %1246 = vmatpush1.bf16.msra.mxu0 0
      %1247 = vmatprep.subr.bf16.mxu0 0
      %1248 = vmatpush1.bf16.msra.mxu0 0
      %1249 = vmatprep.subr.bf16.mxu0 0
      %1250 = vmatpush1.bf16.msra.mxu0 0
      %1251 = vmatprep.subr.bf16.mxu0 0
      %1252 = vmatpush1.bf16.msra.mxu0 0
      %1253 = vmatprep.subr.bf16.mxu0 0
      %1254 = vmatpush1.bf16.msra.mxu0 0
      %1255 = vmatprep.subr.bf16.mxu0 0
      %1256 = vmatpush1.bf16.msra.mxu0 0
      %1257 = vmatprep.subr.bf16.mxu0 0
      %1258 = vmatpush1.bf16.msra.mxu0 0
      %1259 = vmatprep.subr.bf16.mxu0 0
      %1260 = vmatpush1.bf16.msra.mxu0 0
      %1261 = vmatprep.subr.bf16.mxu0 0
      %1262 = vmatpush1.bf16.msra.mxu0 0
      %1263 = vmatprep.subr.bf16.mxu0 0
      %1264 = vmatpush1.bf16.msra.mxu0 0
      %1265 = vmatprep.mubr.bf16.mxu0 0
      %1266 = vmatmul.mubr.bf16.gmra.mrb[0].mxu0 %v1183
      %v1267 = vpop.f32.mrb[0].mxu0
      %v1268 = vadd.f32 0.0, %v1267
      %v1269 = vpop.f32.mrb[0].mxu0
      %v1270 = vpop.f32.mrb[0].mxu0
      %v1271 = vadd.f32 0.0, %v1270
      %v1272 = vpop.f32.mrb[0].mxu0
      %1273 = vmatprep.mubr.bf16.mxu0 0
      %1274 = vmatmul.mubr.bf16.gmra.mrb[0].mxu0 %v1186
      %v1275 = vpop.f32.mrb[0].mxu0
      %v1276 = vadd.f32 0.0, %v1275
      %v1277 = vpop.f32.mrb[0].mxu0
      %v1278 = vpop.f32.mrb[0].mxu0
      %v1279 = vadd.f32 0.0, %v1278
      %v1280 = vpop.f32.mrb[0].mxu0
      %1281 = vmatprep.mubr.bf16.mxu0 0
      %1282 = vmatmul.mubr.bf16.gmra.mrb[0].mxu0 %v1189
      %v1283 = vpop.f32.mrb[0].mxu0
      %v1284 = vadd.f32 0.0, %v1283
      %v1285 = vpop.f32.mrb[0].mxu0
      %v1286 = vpop.f32.mrb[0].mxu0
      %v1287 = vadd.f32 0.0, %v1286
      %v1288 = vpop.f32.mrb[0].mxu0
      %1289 = vmatprep.mubr.bf16.mxu0 0
      %1290 = vmatmul.mubr.bf16.gmra.mrb[0].mxu0 %v1192
      %v1291 = vpop.f32.mrb[0].mxu0
      %v1292 = vadd.f32 0.0, %v1291
      %v1293 = vpop.f32.mrb[0].mxu0
      %v1294 = vpop.f32.mrb[0].mxu0
      %v1295 = vadd.f32 0.0, %v1294
      %v1296 = vpop.f32.mrb[0].mxu0
      %1297 = vmatprep.mubr.bf16.mxu0 0
      %1298 = vmatmul.mubr.bf16.gmra.mrb[0].mxu0 %v1195
      %v1299 = vpop.f32.mrb[0].mxu0
      %v1300 = vadd.f32 0.0, %v1299
      %v1301 = vpop.f32.mrb[0].mxu0
      %v1302 = vpop.f32.mrb[0].mxu0
      %v1303 = vadd.f32 0.0, %v1302
      %v1304 = vpop.f32.mrb[0].mxu0
      %1305 = vmatprep.mubr.bf16.mxu0 0
      %1306 = vmatmul.mubr.bf16.gmra.mrb[0].mxu0 %v1198
      %v1307 = vpop.f32.mrb[0].mxu0
      %v1308 = vadd.f32 0.0, %v1307
      %v1309 = vpop.f32.mrb[0].mxu0
      %v1310 = vpop.f32.mrb[0].mxu0
      %v1311 = vadd.f32 0.0, %v1310
      %v1312 = vpop.f32.mrb[0].mxu0
      %1313 = vmatprep.mubr.bf16.mxu0 0
      %1314 = vmatmul.mubr.bf16.gmra.mrb[0].mxu0 %v1201
      %v1315 = vpop.f32.mrb[0].mxu0
      %v1316 = vadd.f32 0.0, %v1315
      %v1317 = vpop.f32.mrb[0].mxu0
      %v1318 = vpop.f32.mrb[0].mxu0
      %v1319 = vadd.f32 0.0, %v1318
      %v1320 = vpop.f32.mrb[0].mxu0
      %1321 = vmatprep.mubr.bf16.mxu0 0
      %1322 = vmatmul.mubr.bf16.gmra.mrb[0].mxu0 %v1204
      %v1323 = vpop.f32.mrb[0].mxu0
      %v1324 = vadd.f32 0.0, %v1323
      %v1325 = vpop.f32.mrb[0].mxu0
      %v1326 = vpop.f32.mrb[0].mxu0
      %v1327 = vadd.f32 0.0, %v1326
      %v1328 = vpop.f32.mrb[0].mxu0
      %1329 = vmatprep.mubr.bf16.mxu0 0
      %1330 = vmatmul.mubr.bf16.gmra.mrb[0].mxu0 %v1207
      %v1331 = vpop.f32.mrb[0].mxu0
      %v1332 = vadd.f32 0.0, %v1331
      %v1333 = vpop.f32.mrb[0].mxu0
      %v1334 = vpop.f32.mrb[0].mxu0
      %v1335 = vadd.f32 0.0, %v1334
      %v1336 = vpop.f32.mrb[0].mxu0
      %1337 = vmatprep.mubr.bf16.mxu0 0
      %1338 = vmatmul.mubr.bf16.gmra.mrb[0].mxu0 %v1210
      %v1339 = vpop.f32.mrb[0].mxu0
      %v1340 = vadd.f32 0.0, %v1339
      %v1341 = vpop.f32.mrb[0].mxu0
      %v1342 = vpop.f32.mrb[0].mxu0
      %v1343 = vadd.f32 0.0, %v1342
      %v1344 = vpop.f32.mrb[0].mxu0
      %1345 = vmatprep.mubr.bf16.mxu0 0
      %1346 = vmatmul.mubr.bf16.gmra.mrb[0].mxu0 %v1213
      %v1347 = vpop.f32.mrb[0].mxu0
      %v1348 = vadd.f32 0.0, %v1347
      %v1349 = vpop.f32.mrb[0].mxu0
      %v1350 = vpop.f32.mrb[0].mxu0
      %v1351 = vadd.f32 0.0, %v1350
      %v1352 = vpop.f32.mrb[0].mxu0
      %1353 = vmatprep.mubr.bf16.mxu0 0
      %1354 = vmatmul.mubr.bf16.gmra.mrb[0].mxu0 %v1216
      %v1355 = vpop.f32.mrb[0].mxu0
      %v1356 = vadd.f32 0.0, %v1355
      %v1357 = vpop.f32.mrb[0].mxu0
      %v1358 = vpop.f32.mrb[0].mxu0
      %v1359 = vadd.f32 0.0, %v1358
      %v1360 = vpop.f32.mrb[0].mxu0
      %1361 = vmatprep.mubr.bf16.mxu0 0
      %1362 = vmatmul.mubr.bf16.gmra.mrb[0].mxu0 %v1219
      %v1363 = vpop.f32.mrb[0].mxu0
      %v1364 = vadd.f32 0.0, %v1363
      %v1365 = vpop.f32.mrb[0].mxu0
      %v1366 = vpop.f32.mrb[0].mxu0
      %v1367 = vadd.f32 0.0, %v1366
      %v1368 = vpop.f32.mrb[0].mxu0
      %1369 = vmatprep.mubr.bf16.mxu0 0
      %1370 = vmatmul.mubr.bf16.gmra.mrb[0].mxu0 %v1222
      %v1371 = vpop.f32.mrb[0].mxu0
      %v1372 = vadd.f32 0.0, %v1371
      %v1373 = vpop.f32.mrb[0].mxu0
      %v1374 = vpop.f32.mrb[0].mxu0
      %v1375 = vadd.f32 0.0, %v1374
      %v1376 = vpop.f32.mrb[0].mxu0
      %1377 = vmatprep.mubr.bf16.mxu0 0
      %1378 = vmatmul.mubr.bf16.gmra.mrb[0].mxu0 %v1225
      %v1379 = vpop.f32.mrb[0].mxu0
      %v1380 = vadd.f32 0.0, %v1379
      %v1381 = vpop.f32.mrb[0].mxu0
      %v1382 = vpop.f32.mrb[0].mxu0
      %v1383 = vadd.f32 0.0, %v1382
      %v1384 = vpop.f32.mrb[0].mxu0
      %1385 = vmatprep.mubr.bf16.mxu0 0
      %1386 = vmatmul.mubr.bf16.gmra.mrb[0].mxu0 %v1228
      %v1387 = vpop.f32.mrb[0].mxu0
      %v1388 = vadd.f32 0.0, %v1387
      %v1389 = vpop.f32.mrb[0].mxu0
      %v1390 = vpop.f32.mrb[0].mxu0
      %v1391 = vadd.f32 0.0, %v1390
      %v1392 = vpop.f32.mrb[0].mxu0
      %1393 = vdwg.mxu0
      %v1394 = vadd.f32 %v1062, %v1268
      %v1395 = vadd.f32 %v1063, %v1271
      %v1396 = vadd.f32 %v1064, %v1276
      %v1397 = vadd.f32 %v1065, %v1279
      %v1398 = vadd.f32 %v1066, %v1284
      %v1399 = vadd.f32 %v1067, %v1287
      %v1400 = vadd.f32 %v1068, %v1292
      %v1401 = vadd.f32 %v1069, %v1295
      %v1402 = vadd.f32 %v1070, %v1300
      %v1403 = vadd.f32 %v1071, %v1303
      %v1404 = vadd.f32 %v1072, %v1308
      %v1405 = vadd.f32 %v1073, %v1311
      %v1406 = vadd.f32 %v1074, %v1316
      %v1407 = vadd.f32 %v1075, %v1319
      %v1408 = vadd.f32 %v1076, %v1324
      %v1409 = vadd.f32 %v1077, %v1327
      %v1410 = vadd.f32 %v1078, %v1332
      %v1411 = vadd.f32 %v1079, %v1335
      %v1412 = vadd.f32 %v1080, %v1340
      %v1413 = vadd.f32 %v1081, %v1343
      %v1414 = vadd.f32 %v1082, %v1348
      %v1415 = vadd.f32 %v1083, %v1351
      %v1416 = vadd.f32 %v1084, %v1356
      %v1417 = vadd.f32 %v1085, %v1359
      %v1418 = vadd.f32 %v1086, %v1364
      %v1419 = vadd.f32 %v1087, %v1367
      %v1420 = vadd.f32 %v1088, %v1372
      %v1421 = vadd.f32 %v1089, %v1375
      %v1422 = vadd.f32 %v1090, %v1380
      %v1423 = vadd.f32 %v1091, %v1383
      %v1424 = vadd.f32 %v1092, %v1388
      %v1425 = vadd.f32 %v1093, %v1391
      %1426 = vst [vmem:[#allocation2] sm:$0xff] %v1394
      %1427 = vst [vmem:[#allocation2 + $0x8] sm:$0xff] %v1395
      %1428 = vst [vmem:[#allocation2 + $0x10] sm:$0xff] %v1396
      %1429 = vst [vmem:[#allocation2 + $0x18] sm:$0xff] %v1397
      %1430 = vst [vmem:[#allocation2 + $0x20] sm:$0xff] %v1398
      %1431 = vst [vmem:[#allocation2 + $0x28] sm:$0xff] %v1399
      %1432 = vst [vmem:[#allocation2 + $0x30] sm:$0xff] %v1400
      %1433 = vst [vmem:[#allocation2 + $0x38] sm:$0xff] %v1401
      %1434 = vst [vmem:[#allocation2 + $0x40] sm:$0xff] %v1402
      %1435 = vst [vmem:[#allocation2 + $0x48] sm:$0xff] %v1403
      %1436 = vst [vmem:[#allocation2 + $0x50] sm:$0xff] %v1404
      %1437 = vst [vmem:[#allocation2 + $0x58] sm:$0xff] %v1405
      %1438 = vst [vmem:[#allocation2 + $0x60] sm:$0xff] %v1406
      %1439 = vst [vmem:[#allocation2 + $0x68] sm:$0xff] %v1407
      %1440 = vst [vmem:[#allocation2 + $0x70] sm:$0xff] %v1408
      %1441 = vst [vmem:[#allocation2 + $0x78] sm:$0xff] %v1409
      %1442 = vst [vmem:[#allocation2 + $0x80] sm:$0xff] %v1410
      %1443 = vst [vmem:[#allocation2 + $0x88] sm:$0xff] %v1411
      %1444 = vst [vmem:[#allocation2 + $0x90] sm:$0xff] %v1412
      %1445 = vst [vmem:[#allocation2 + $0x98] sm:$0xff] %v1413
      %1446 = vst [vmem:[#allocation2 + $0xa0] sm:$0xff] %v1414
      %1447 = vst [vmem:[#allocation2 + $0xa8] sm:$0xff] %v1415
      %1448 = vst [vmem:[#allocation2 + $0xb0] sm:$0xff] %v1416
      %1449 = vst [vmem:[#allocation2 + $0xb8] sm:$0xff] %v1417
      %1450 = vst [vmem:[#allocation2 + $0xc0] sm:$0xff] %v1418
      %1451 = vst [vmem:[#allocation2 + $0xc8] sm:$0xff] %v1419
      %1452 = vst [vmem:[#allocation2 + $0xd0] sm:$0xff] %v1420
      %1453 = vst [vmem:[#allocation2 + $0xd8] sm:$0xff] %v1421
      %1454 = vst [vmem:[#allocation2 + $0xe0] sm:$0xff] %v1422
      %1455 = vst [vmem:[#allocation2 + $0xe8] sm:$0xff] %v1423
      %1456 = vst [vmem:[#allocation2 + $0xf0] sm:$0xff] %v1424
      %1457 = vst [vmem:[#allocation2 + $0xf8] sm:$0xff] %v1425
      %v1458 = vld [vmem:[#allocation2] sm:$0xff]
      %v1459 = vld [vmem:[#allocation2 + $0x8] sm:$0xff]
      %v1460 = vld [vmem:[#allocation2 + $0x10] sm:$0xff]
      %v1461 = vld [vmem:[#allocation2 + $0x18] sm:$0xff]
      %v1462 = vld [vmem:[#allocation2 + $0x20] sm:$0xff]
      %v1463 = vld [vmem:[#allocation2 + $0x28] sm:$0xff]
      %v1464 = vld [vmem:[#allocation2 + $0x30] sm:$0xff]
      %v1465 = vld [vmem:[#allocation2 + $0x38] sm:$0xff]
      %v1466 = vld [vmem:[#allocation2 + $0x40] sm:$0xff]
      %v1467 = vld [vmem:[#allocation2 + $0x48] sm:$0xff]
      %v1468 = vld [vmem:[#allocation2 + $0x50] sm:$0xff]
      %v1469 = vld [vmem:[#allocation2 + $0x58] sm:$0xff]
      %v1470 = vld [vmem:[#allocation2 + $0x60] sm:$0xff]
      %v1471 = vld [vmem:[#allocation2 + $0x68] sm:$0xff]
      %v1472 = vld [vmem:[#allocation2 + $0x70] sm:$0xff]
      %v1473 = vld [vmem:[#allocation2 + $0x78] sm:$0xff]
      %v1474 = vld [vmem:[#allocation2 + $0x80] sm:$0xff]
      %v1475 = vld [vmem:[#allocation2 + $0x88] sm:$0xff]
      %v1476 = vld [vmem:[#allocation2 + $0x90] sm:$0xff]
      %v1477 = vld [vmem:[#allocation2 + $0x98] sm:$0xff]
      %v1478 = vld [vmem:[#allocation2 + $0xa0] sm:$0xff]
      %v1479 = vld [vmem:[#allocation2 + $0xa8] sm:$0xff]
      %v1480 = vld [vmem:[#allocation2 + $0xb0] sm:$0xff]
      %v1481 = vld [vmem:[#allocation2 + $0xb8] sm:$0xff]
      %v1482 = vld [vmem:[#allocation2 + $0xc0] sm:$0xff]
      %v1483 = vld [vmem:[#allocation2 + $0xc8] sm:$0xff]
      %v1484 = vld [vmem:[#allocation2 + $0xd0] sm:$0xff]
      %v1485 = vld [vmem:[#allocation2 + $0xd8] sm:$0xff]
      %v1486 = vld [vmem:[#allocation2 + $0xe0] sm:$0xff]
      %v1487 = vld [vmem:[#allocation2 + $0xe8] sm:$0xff]
      %v1488 = vld [vmem:[#allocation2 + $0xf0] sm:$0xff]
      %v1489 = vld [vmem:[#allocation2 + $0xf8] sm:$0xff]
      %v1490 = vld [vmem:[%s2] sm:$0x1]
      %v1492 = vlaneseq
      %v1493 = vshrl.u32 %v1492, 7
      %v1494 = vsub.s32 0, %v1493
      %v1495 = vrot.slane %v1490, %v1494
      %v1497 = vadd.f32 %v1458, %v1495
      %v1498 = vadd.f32 %v1459, %v1495
      %v1499 = vadd.f32 %v1460, %v1495
      %v1500 = vadd.f32 %v1461, %v1495
      %v1501 = vadd.f32 %v1462, %v1495
      %v1502 = vadd.f32 %v1463, %v1495
      %v1503 = vadd.f32 %v1464, %v1495
      %v1504 = vadd.f32 %v1465, %v1495
      %v1505 = vadd.f32 %v1466, %v1495
      %v1506 = vadd.f32 %v1467, %v1495
      %v1507 = vadd.f32 %v1468, %v1495
      %v1508 = vadd.f32 %v1469, %v1495
      %v1509 = vadd.f32 %v1470, %v1495
      %v1510 = vadd.f32 %v1471, %v1495
      %v1511 = vadd.f32 %v1472, %v1495
      %v1512 = vadd.f32 %v1473, %v1495
      %v1513 = vadd.f32 %v1474, %v1495
      %v1514 = vadd.f32 %v1475, %v1495
      %v1515 = vadd.f32 %v1476, %v1495
      %v1516 = vadd.f32 %v1477, %v1495
      %v1517 = vadd.f32 %v1478, %v1495
      %v1518 = vadd.f32 %v1479, %v1495
      %v1519 = vadd.f32 %v1480, %v1495
      %v1520 = vadd.f32 %v1481, %v1495
      %v1521 = vadd.f32 %v1482, %v1495
      %v1522 = vadd.f32 %v1483, %v1495
      %v1523 = vadd.f32 %v1484, %v1495
      %v1524 = vadd.f32 %v1485, %v1495
      %v1525 = vadd.f32 %v1486, %v1495
      %v1526 = vadd.f32 %v1487, %v1495
      %v1527 = vadd.f32 %v1488, %v1495
      %v1528 = vadd.f32 %v1489, %v1495
      %s1529 = sld [smem:[#allocation3]]
      %vm1530 = vcmp.gt.f32.partialorder %v1497, 0.0
      %vm1531 = vcmp.gt.f32.partialorder %v1498, 0.0
      %vm1532 = vcmp.gt.f32.partialorder %v1499, 0.0
      %vm1533 = vcmp.gt.f32.partialorder %v1500, 0.0
      %vm1534 = vcmp.gt.f32.partialorder %v1501, 0.0
      %vm1535 = vcmp.gt.f32.partialorder %v1502, 0.0
      %vm1536 = vcmp.gt.f32.partialorder %v1503, 0.0
      %vm1537 = vcmp.gt.f32.partialorder %v1504, 0.0
      %vm1538 = vcmp.gt.f32.partialorder %v1505, 0.0
      %vm1539 = vcmp.gt.f32.partialorder %v1506, 0.0
      %vm1540 = vcmp.gt.f32.partialorder %v1507, 0.0
      %vm1541 = vcmp.gt.f32.partialorder %v1508, 0.0
      %vm1542 = vcmp.gt.f32.partialorder %v1509, 0.0
      %vm1543 = vcmp.gt.f32.partialorder %v1510, 0.0
      %vm1544 = vcmp.gt.f32.partialorder %v1511, 0.0
      %vm1545 = vcmp.gt.f32.partialorder %v1512, 0.0
      %vm1546 = vcmp.gt.f32.partialorder %v1513, 0.0
      %vm1547 = vcmp.gt.f32.partialorder %v1514, 0.0
      %vm1548 = vcmp.gt.f32.partialorder %v1515, 0.0
      %vm1549 = vcmp.gt.f32.partialorder %v1516, 0.0
      %vm1550 = vcmp.gt.f32.partialorder %v1517, 0.0
      %vm1551 = vcmp.gt.f32.partialorder %v1518, 0.0
      %vm1552 = vcmp.gt.f32.partialorder %v1519, 0.0
      %vm1553 = vcmp.gt.f32.partialorder %v1520, 0.0
      %vm1554 = vcmp.gt.f32.partialorder %v1521, 0.0
      %vm1555 = vcmp.gt.f32.partialorder %v1522, 0.0
      %vm1556 = vcmp.gt.f32.partialorder %v1523, 0.0
      %vm1557 = vcmp.gt.f32.partialorder %v1524, 0.0
      %vm1558 = vcmp.gt.f32.partialorder %v1525, 0.0
      %vm1559 = vcmp.gt.f32.partialorder %v1526, 0.0
      %vm1560 = vcmp.gt.f32.partialorder %v1527, 0.0
      %vm1561 = vcmp.gt.f32.partialorder %v1528, 0.0
      %v1562 = vstv %s1529
      %v1563 = vmul.f32 %v1562, %v1497
      %v1564 = vmul.f32 %v1562, %v1498
      %v1565 = vmul.f32 %v1562, %v1499
      %v1566 = vmul.f32 %v1562, %v1500
      %v1567 = vmul.f32 %v1562, %v1501
      %v1568 = vmul.f32 %v1562, %v1502
      %v1569 = vmul.f32 %v1562, %v1503
      %v1570 = vmul.f32 %v1562, %v1504
      %v1571 = vmul.f32 %v1562, %v1505
      %v1572 = vmul.f32 %v1562, %v1506
      %v1573 = vmul.f32 %v1562, %v1507
      %v1574 = vmul.f32 %v1562, %v1508
      %v1575 = vmul.f32 %v1562, %v1509
      %v1576 = vmul.f32 %v1562, %v1510
      %v1577 = vmul.f32 %v1562, %v1511
      %v1578 = vmul.f32 %v1562, %v1512
      %v1579 = vmul.f32 %v1562, %v1513
      %v1580 = vmul.f32 %v1562, %v1514
      %v1581 = vmul.f32 %v1562, %v1515
      %v1582 = vmul.f32 %v1562, %v1516
      %v1583 = vmul.f32 %v1562, %v1517
      %v1584 = vmul.f32 %v1562, %v1518
      %v1585 = vmul.f32 %v1562, %v1519
      %v1586 = vmul.f32 %v1562, %v1520
      %v1587 = vmul.f32 %v1562, %v1521
      %v1588 = vmul.f32 %v1562, %v1522
      %v1589 = vmul.f32 %v1562, %v1523
      %v1590 = vmul.f32 %v1562, %v1524
      %v1591 = vmul.f32 %v1562, %v1525
      %v1592 = vmul.f32 %v1562, %v1526
      %v1593 = vmul.f32 %v1562, %v1527
      %v1594 = vmul.f32 %v1562, %v1528
      %v1595 = vsel %vm1530, %v1497, %v1563
      %v1596 = vsel %vm1531, %v1498, %v1564
      %v1597 = vsel %vm1532, %v1499, %v1565
      %v1598 = vsel %vm1533, %v1500, %v1566
      %v1599 = vsel %vm1534, %v1501, %v1567
      %v1600 = vsel %vm1535, %v1502, %v1568
      %v1601 = vsel %vm1536, %v1503, %v1569
      %v1602 = vsel %vm1537, %v1504, %v1570
      %v1603 = vsel %vm1538, %v1505, %v1571
      %v1604 = vsel %vm1539, %v1506, %v1572
      %v1605 = vsel %vm1540, %v1507, %v1573
      %v1606 = vsel %vm1541, %v1508, %v1574
      %v1607 = vsel %vm1542, %v1509, %v1575
      %v1608 = vsel %vm1543, %v1510, %v1576
      %v1609 = vsel %vm1544, %v1511, %v1577
      %v1610 = vsel %vm1545, %v1512, %v1578
      %v1611 = vsel %vm1546, %v1513, %v1579
      %v1612 = vsel %vm1547, %v1514, %v1580
      %v1613 = vsel %vm1548, %v1515, %v1581
      %v1614 = vsel %vm1549, %v1516, %v1582
      %v1615 = vsel %vm1550, %v1517, %v1583
      %v1616 = vsel %vm1551, %v1518, %v1584
      %v1617 = vsel %vm1552, %v1519, %v1585
      %v1618 = vsel %vm1553, %v1520, %v1586
      %v1619 = vsel %vm1554, %v1521, %v1587
      %v1620 = vsel %vm1555, %v1522, %v1588
      %v1621 = vsel %vm1556, %v1523, %v1589
      %v1622 = vsel %vm1557, %v1524, %v1590
      %v1623 = vsel %vm1558, %v1525, %v1591
      %v1624 = vsel %vm1559, %v1526, %v1592
      %v1625 = vsel %vm1560, %v1527, %v1593
      %v1626 = vsel %vm1561, %v1528, %v1594
      %1627 = vxpose.xlu0.b32.start [1/16] %v1595, 128
      %1628 = vxpose.xlu0.b32.cont [2/16] %v1596, 128
      %1629 = vxpose.xlu0.b32.cont [3/16] %v1597, 128
      %1630 = vxpose.xlu0.b32.cont [4/16] %v1598, 128
      %1631 = vxpose.xlu0.b32.cont [5/16] %v1599, 128
      %1632 = vxpose.xlu0.b32.cont [6/16] %v1600, 128
      %1633 = vxpose.xlu0.b32.cont [7/16] %v1601, 128
      %1634 = vxpose.xlu0.b32.cont [8/16] %v1602, 128
      %1635 = vxpose.xlu0.b32.cont [9/16] %v1603, 128
      %1636 = vxpose.xlu0.b32.cont [10/16] %v1604, 128
      %1637 = vxpose.xlu0.b32.cont [11/16] %v1605, 128
      %1638 = vxpose.xlu0.b32.cont [12/16] %v1606, 128
      %1639 = vxpose.xlu0.b32.cont [13/16] %v1607, 128
      %1640 = vxpose.xlu0.b32.cont [14/16] %v1608, 128
      %1641 = vxpose.xlu0.b32.cont [15/16] %v1609, 128
      %1642 = vxpose.xlu0.b32.end [16/16] %v1610, 128
      %v1643 = vpop.trf.xlu0
      %v1644 = vpop.trf.xlu0
      %v1645 = vpop.trf.xlu0
      %v1646 = vpop.trf.xlu0
      %v1647 = vpop.trf.xlu0
      %v1648 = vpop.trf.xlu0
      %v1649 = vpop.trf.xlu0
      %v1650 = vpop.trf.xlu0
      %v1651 = vpop.trf.xlu0
      %v1652 = vpop.trf.xlu0
      %v1653 = vpop.trf.xlu0
      %v1654 = vpop.trf.xlu0
      %v1655 = vpop.trf.xlu0
      %v1656 = vpop.trf.xlu0
      %v1657 = vpop.trf.xlu0
      %v1658 = vpop.trf.xlu0
      %1659 = vxpose.xlu0.b32.start [1/16] %v1611, 128
      %1660 = vxpose.xlu0.b32.cont [2/16] %v1612, 128
      %1661 = vxpose.xlu0.b32.cont [3/16] %v1613, 128
      %1662 = vxpose.xlu0.b32.cont [4/16] %v1614, 128
      %1663 = vxpose.xlu0.b32.cont [5/16] %v1615, 128
      %1664 = vxpose.xlu0.b32.cont [6/16] %v1616, 128
      %1665 = vxpose.xlu0.b32.cont [7/16] %v1617, 128
      %1666 = vxpose.xlu0.b32.cont [8/16] %v1618, 128
      %1667 = vxpose.xlu0.b32.cont [9/16] %v1619, 128
      %1668 = vxpose.xlu0.b32.cont [10/16] %v1620, 128
      %1669 = vxpose.xlu0.b32.cont [11/16] %v1621, 128
      %1670 = vxpose.xlu0.b32.cont [12/16] %v1622, 128
      %1671 = vxpose.xlu0.b32.cont [13/16] %v1623, 128
      %1672 = vxpose.xlu0.b32.cont [14/16] %v1624, 128
      %1673 = vxpose.xlu0.b32.cont [15/16] %v1625, 128
      %1674 = vxpose.xlu0.b32.end [16/16] %v1626, 128
      %v1675 = vpop.trf.xlu0
      %v1676 = vpop.trf.xlu0
      %v1677 = vpop.trf.xlu0
      %v1678 = vpop.trf.xlu0
      %v1679 = vpop.trf.xlu0
      %v1680 = vpop.trf.xlu0
      %v1681 = vpop.trf.xlu0
      %v1682 = vpop.trf.xlu0
      %v1683 = vpop.trf.xlu0
      %v1684 = vpop.trf.xlu0
      %v1685 = vpop.trf.xlu0
      %v1686 = vpop.trf.xlu0
      %v1687 = vpop.trf.xlu0
      %v1688 = vpop.trf.xlu0
      %v1689 = vpop.trf.xlu0
      %v1690 = vpop.trf.xlu0
      %1691 = vst [vmem:[%s234] sm:$0xff] %v1643
      %1692 = vst [vmem:[%s234 + $0x8] sm:$0xff] %v1675
      %s1693 = smul.u32 2, %s21
      %p1694 = scmp.lt.s32.totalorder %s20, 1
      %s1695 = scalar_select %p1694, %s20, 1
      %p1696 = scmp.lt.s32.totalorder %s1693, 1
      %s1697 = scalar_select %p1696, %s1693, 1
      %s1698 = smul.addr %s1695, 2
      %s1699 = sadd.s32 %s1697, %s1698
      %s1700 = smul.addr %s1699, 8
      %s1701 = scalar_lea.vmem %s4, %s1700
      // Predicated region
      $region37: #{_lambda_.1} parent=35 // pred_check
        %p1702 = pneg %p139
      $region38: #{_lambda_.1} parent=35 // pred_check_branch
        %1704 = sbr.rel (%p1702) target = $region40
      $region39: #{_lambda_.1} parent=35 // pred_region
        %s1705 = smul.u32 2, %s21
      $region40: #{_lambda_.1} parent=35 // pred_fallthru
        _
    $region36: #{_lambda_.1} parent=5 // pred_fallthru
      _
    %p1706 = scmp.le.s32.totalorder 2, %s11
    // Predicated region
    $region41: #{_lambda_.1} parent=5 // pred_check
      %p1707 = pneg %p1706
    $region42: #{_lambda_.1} parent=5 // pred_check_branch
      %1709 = sbr.rel (%p1707) target = $region44
    $region43: #{_lambda_.1} parent=5 // pred_region
      %s1710 = ssub.s32 %s11, 2
      // Predicated region
      $region45: #{_lambda_.1} parent=43 // pred_check
        %p1711 = pneg %p145
      $region46: #{_lambda_.1} parent=43 // pred_check_branch
        %1713 = sbr.rel (%p1711) target = $region48
      $region47: #{_lambda_.1} parent=43 // pred_region
        %s1714 = smul.u32 2, %s23
        %p1715 = scmp.lt.s32.totalorder %s22, 1
        %s1716 = scalar_select %p1715, %s22, 1
        %p1717 = scmp.lt.s32.totalorder %s1714, 1
        %s1718 = scalar_select %p1717, %s1714, 1
        %s1719 = smul.addr %s1716, 2
        %s1720 = sadd.s32 %s1718, %s1719
        %s1721 = smul.addr %s1720, 8
        %s1722 = scalar_lea.vmem %s4, %s1721
      $region48: #{_lambda_.1} parent=43 // pred_fallthru
        _
    $region44: #{_lambda_.1} parent=5 // pred_fallthru
      _
  $region6: #{_lambda_.1} parent=0 // loop_footer
    %s15 = sadd.s32 1, %s11
  $region7: #{_lambda_.1} parent=0 // loop_footer_branch
    %10 = sbr.rel target = $region3
  $region8: #{_lambda_.1} parent=0 // loop_exit
    _

</llo_original>
